<compile_context>
chip_gen: v7x
topology: tpu7x:2x2x1
jax: 0.10.0
libtpu: 0.0.40
codegen_flags: <defaults>
</compile_context>

<pallas_src>
import functools

import jax
import jax.numpy as jnp
from jax.experimental import pallas as pl
from jax.experimental.pallas import tpu as pltpu

KSIZE = 7
PAD = (KSIZE - 1) // 2
N_TAPS = KSIZE * KSIZE


def _lesion_attention_kernel(x_ref, w12_ref, wmask_ref, o_ref, *, W, Cr):
    # x_ref:    (Bblk, C, HW) lane-dense block.
    # w12_ref:  (C, 2*Cr) = [w1^T | w2] (one DMA for both MLP weights).
    # wmask_ref:(49, 2, HW) pre-masked per-tap conv weights (row 0 = avg, row 1 = max).
    Bblk, C, HW = x_ref.shape

    w12 = w12_ref[...]
    w1t = w12[:, :Cr]                                    # (C, Cr)
    w2 = w12[:, Cr:]                                     # (C, Cr)

    for b in range(Bblk):                                # statically unrolled (1 or B)
        x = x_ref[b]                                     # (C, HW) f32

        # ---------------- channel attention (tiny -> pure VPU, no MXU) ----------------
        avg_c = jnp.mean(x, axis=1, keepdims=True)       # (C, 1)  lane reduce
        max_c = jnp.max(x, axis=1, keepdims=True)        # (C, 1)
        h_avg = jnp.maximum(jnp.sum(w1t * avg_c, axis=0, keepdims=True), 0.0)  # (1, Cr)
        h_max = jnp.maximum(jnp.sum(w1t * max_c, axis=0, keepdims=True), 0.0)  # (1, Cr)
        # w2 @ relu(h_avg) + w2 @ relu(h_max) == w2 @ (relu(h_avg) + relu(h_max))
        mlp_out = jnp.sum(w2 * (h_avg + h_max), axis=1, keepdims=True)         # (C, 1)
        channel_att = jax.nn.sigmoid(mlp_out)            # (C, 1)
        xc = x * channel_att                             # (C, HW) lane-broadcast mul

        # -------- spatial attention: 7x7 'SAME' conv over [mean_c, max_c] --------
        avg_sp = jnp.mean(xc, axis=0, keepdims=True)     # (1, HW) sublane reduce
        max_sp = jnp.max(xc, axis=0, keepdims=True)      # (1, HW)
        sp = jnp.concatenate([avg_sp, max_sp], axis=0)   # (2, HW) one stacked map

        # 4 round-robin partial accumulators break the 49-deep add dependence.
        accs = [jnp.zeros((2, HW), jnp.float32) for _ in range(4)]
        for ki in range(KSIZE):                          # statically unrolled 7x7 taps
            for kj in range(KSIZE):
                di, dj = ki - PAD, kj - PAD
                s = di * W + dj                          # flattened source offset
                t = ki * KSIZE + kj
                if s == 0:
                    rolled = sp
                else:
                    rolled = pltpu.roll(sp, shift=(-s) % HW, axis=1)  # out[p] = sp[p+s]
                # wmask[t] carries the tap weight AND the zero 'SAME' padding mask.
                accs[t % 4] = accs[t % 4] + wmask_ref[t] * rolled
        conv = (accs[0] + accs[1]) + (accs[2] + accs[3])                     # (2, HW)
        spatial_att = jax.nn.sigmoid(jnp.sum(conv, axis=0, keepdims=True))   # (1, HW)

        o_ref[b] = (xc * spatial_att).astype(o_ref.dtype)  # lane-dense, unmasked store


def _spatial_weight_planes(w_spatial, H, W, dtype):
    """Fold 7x7 weights and the 'SAME' zero-padding masks into 49 (2, H*W) planes."""
    HW = H * W
    lin = jnp.arange(HW, dtype=jnp.int32)
    row = lin // W
    col = lin % W
    planes = []
    for ki in range(KSIZE):
        for kj in range(KSIZE):
            di, dj = ki - PAD, kj - PAD
            valid = ((row + di >= 0) & (row + di < H)
                     & (col + dj >= 0) & (col + dj < W)).astype(dtype)       # (HW,)
            planes.append(w_spatial[:, ki, kj][:, None] * valid[None, :])    # (2, HW)
    return jnp.stack(planes, axis=0)                                         # (49, 2, HW)


def lesion_attention(x, w1, w2, w_spatial, *, batch_parallel=True):
    """x: (B, C, H, W); w1: (C//r, C); w2: (C, C//r); w_spatial: (2, 7, 7).

    batch_parallel=True  -> grid=(B,) marked "parallel" (shards over v7x's 2 TCs).
    batch_parallel=False -> whole batch in one grid step (lower fixed per-step
                            overhead on single-TC v5e / v6e at these small shapes).
    """
    B, C, H, W = x.shape
    Cr = w1.shape[0]
    HW = H * W

    x_flat = x.reshape(B, C, HW)                  # lane-dense: HW is a multiple of 128
    w12 = jnp.concatenate([w1.T, w2], axis=1)     # (C, 2*Cr): one DMA instead of two
    wmask = _spatial_weight_planes(w_spatial, H, W, x.dtype)   # (49, 2, HW)

    kernel = functools.partial(_lesion_attention_kernel, W=W, Cr=Cr)

    if batch_parallel:
        grid = (B,)
        x_spec = pl.BlockSpec((1, C, HW), lambda b: (b, 0, 0))
    else:
        grid = (1,)
        x_spec = pl.BlockSpec((B, C, HW), lambda b: (0, 0, 0))

    out_flat = pl.pallas_call(
        kernel,
        out_shape=jax.ShapeDtypeStruct((B, C, HW), x.dtype),
        grid=grid,
        in_specs=[
            x_spec,
            pl.BlockSpec((C, 2 * Cr), lambda b: (0, 0)),
            pl.BlockSpec((N_TAPS, 2, HW), lambda b: (0, 0, 0)),
        ],
        out_specs=x_spec,
        compiler_params=pltpu.CompilerParams(
            dimension_semantics=("parallel",)),
    )(x_flat, w12, wmask)
    return out_flat.reshape(B, C, H, W)


def reference(x, w1, w2, w_spatial):
    """Plain-JAX reference matching the PyTorch forward."""
    avg = jnp.mean(x, axis=(2, 3), keepdims=True)
    mx = jnp.max(x, axis=(2, 3), keepdims=True)

    def mlp(v):
        h = jnp.einsum('bcij,dc->bdij', v, w1)
        h = jax.nn.relu(h)
        return jnp.einsum('bdij,cd->bcij', h, w2)

    ca = jax.nn.sigmoid(mlp(avg) + mlp(mx))
    xc = x * ca
    asp = jnp.mean(xc, axis=1, keepdims=True)
    msp = jnp.max(xc, axis=1, keepdims=True)
    si = jnp.concatenate([asp, msp], axis=1)
    sa = jax.lax.conv_general_dilated(
        si, w_spatial[None], window_strides=(1, 1), padding='SAME',
        dimension_numbers=('NCHW', 'OIHW', 'NCHW'))
    sa = jax.nn.sigmoid(sa)
    return xc * sa


if __name__ == "__main__":
    B, C, H, W = 2, 16, 16, 16
    reduction_ratio = 8
    Cr = C // reduction_ratio

    key = jax.random.PRNGKey(0)
    kx, k1, k2, k3 = jax.random.split(key, 4)
    x = jax.random.normal(kx, (B, C, H, W), dtype=jnp.float32)
    w1 = 0.1 * jax.random.normal(k1, (Cr, C), dtype=jnp.float32)        # Conv2d(C, C//r, 1, bias=False)
    w2 = 0.1 * jax.random.normal(k2, (C, Cr), dtype=jnp.float32)        # Conv2d(C//r, C, 1, bias=False)
    w_spatial = 0.1 * jax.random.normal(k3, (2, KSIZE, KSIZE), dtype=jnp.float32)  # Conv2d(2, 1, 7, bias=False)

    ref = jax.block_until_ready(reference(x, w1, w2, w_spatial))

    # Batch-parallel path (v7x-friendly: grid=(B,) "parallel").
    out_p = jax.block_until_ready(lesion_attention(x, w1, w2, w_spatial, batch_parallel=True))
    # Fused-batch path (single-TC v5e/v6e-friendly: one grid step).
    out_f = jax.block_until_ready(lesion_attention(x, w1, w2, w_spatial, batch_parallel=False))

    err_p = float(jnp.max(jnp.abs(out_p - ref)))
    err_f = float(jnp.max(jnp.abs(out_f - ref)))
    assert out_p.shape == (B, C, H, W) and out_f.shape == (B, C, H, W)
    assert err_p < 1e-3, f"batch-parallel max abs error too large: {err_p}"
    assert err_f < 1e-3, f"fused-batch max abs error too large: {err_f}"
    print("KERNEL_OK")
</pallas_src>

<mosaic_0001>
module attributes {stable_mosaic.version = 11 : i64} {
  func.func @_lesion_attention_kernel(%arg0: i32, %arg1: memref<1x16x256xf32, #tpu.memory_space<vmem>>, %arg2: memref<16x4xf32, #tpu.memory_space<vmem>>, %arg3: memref<49x2x256xf32, #tpu.memory_space<vmem>>, %arg4: memref<1x16x256xf32, #tpu.memory_space<vmem>>) attributes {dimension_semantics = [#tpu.dimension_semantics<parallel>], iteration_bounds = array<i64: 2>, scalar_prefetch = 0 : i64, scratch_operands = 0 : i64, tpu.core_type = #tpu.core_type<tc>, window_params = [{transform_indices = @transform_0, window_bounds = array<i64: 1, 16, 256>}, {pipeline_mode = #tpu.pipeline_mode<synchronous>, transform_indices = @transform_1, window_bounds = array<i64: 16, 4>}, {pipeline_mode = #tpu.pipeline_mode<synchronous>, transform_indices = @transform_2, window_bounds = array<i64: 49, 2, 256>}, {transform_indices = @transform_3, window_bounds = array<i64: 1, 16, 256>}]} {
    %c0 = arith.constant 0 : index
    %c0_0 = arith.constant 0 : index
    %0 = vector.load %arg2[%c0, %c0_0] : memref<16x4xf32, #tpu.memory_space<vmem>>, vector<16x4xf32>
    %1 = vector.extract_strided_slice %0 {offsets = [0, 0], sizes = [16, 2], strides = [1, 1]} : vector<16x4xf32> to vector<16x2xf32>
    %2 = vector.extract_strided_slice %0 {offsets = [0, 2], sizes = [16, 2], strides = [1, 1]} : vector<16x4xf32> to vector<16x2xf32>
    %c0_1 = arith.constant 0 : index
    %c0_2 = arith.constant 0 : index
    %c0_3 = arith.constant 0 : index
    %3 = vector.load %arg1[%c0_1, %c0_2, %c0_3] : memref<1x16x256xf32, #tpu.memory_space<vmem>>, vector<1x16x256xf32>
    %4 = vector.shape_cast %3 : vector<1x16x256xf32> to vector<16x256xf32>
    %cst = arith.constant dense<0.000000e+00> : vector<16xf32>
    %5 = vector.multi_reduction <add>, %4, %cst [1] : vector<16x256xf32> to vector<16xf32>
    %6 = vector.shape_cast %5 : vector<16xf32> to vector<16x1xf32>
    %cst_4 = arith.constant 2.560000e+02 : f32
    %7 = vector.broadcast %cst_4 : f32 to vector<16x1xf32>
    %8 = arith.divf %6, %7 : vector<16x1xf32>
    %cst_5 = arith.constant dense<0xFF800000> : vector<16xf32>
    %9 = vector.multi_reduction <maximumf>, %4, %cst_5 [1] : vector<16x256xf32> to vector<16xf32>
    %10 = vector.shape_cast %9 : vector<16xf32> to vector<16x1xf32>
    %11 = vector.broadcast %8 : vector<16x1xf32> to vector<16x2xf32>
    %12 = arith.mulf %1, %11 : vector<16x2xf32>
    %cst_6 = arith.constant dense<0.000000e+00> : vector<2xf32>
    %13 = vector.multi_reduction <add>, %12, %cst_6 [0] : vector<16x2xf32> to vector<2xf32>
    %14 = vector.shape_cast %13 : vector<2xf32> to vector<1x2xf32>
    %cst_7 = arith.constant 0.000000e+00 : f32
    %15 = vector.broadcast %cst_7 : f32 to vector<1x2xf32>
    %16 = arith.maximumf %14, %15 : vector<1x2xf32>
    %17 = vector.broadcast %10 : vector<16x1xf32> to vector<16x2xf32>
    %18 = arith.mulf %1, %17 : vector<16x2xf32>
    %cst_8 = arith.constant dense<0.000000e+00> : vector<2xf32>
    %19 = vector.multi_reduction <add>, %18, %cst_8 [0] : vector<16x2xf32> to vector<2xf32>
    %20 = vector.shape_cast %19 : vector<2xf32> to vector<1x2xf32>
    %cst_9 = arith.constant 0.000000e+00 : f32
    %21 = vector.broadcast %cst_9 : f32 to vector<1x2xf32>
    %22 = arith.maximumf %20, %21 : vector<1x2xf32>
    %23 = arith.addf %16, %22 : vector<1x2xf32>
    %24 = vector.broadcast %23 : vector<1x2xf32> to vector<16x2xf32>
    %25 = arith.mulf %2, %24 : vector<16x2xf32>
    %cst_10 = arith.constant dense<0.000000e+00> : vector<16xf32>
    %26 = vector.multi_reduction <add>, %25, %cst_10 [1] : vector<16x2xf32> to vector<16xf32>
    %27 = vector.shape_cast %26 : vector<16xf32> to vector<16x1xf32>
    %28 = arith.negf %27 : vector<16x1xf32>
    %29 = math.exp %28 : vector<16x1xf32>
    %cst_11 = arith.constant 1.000000e+00 : f32
    %30 = vector.broadcast %cst_11 : f32 to vector<16x1xf32>
    %31 = arith.addf %30, %29 : vector<16x1xf32>
    %32 = arith.divf %30, %31 : vector<16x1xf32>
    %33 = vector.broadcast %32 : vector<16x1xf32> to vector<16x256xf32>
    %34 = arith.mulf %4, %33 : vector<16x256xf32>
    %cst_12 = arith.constant dense<0.000000e+00> : vector<256xf32>
    %35 = vector.multi_reduction <add>, %34, %cst_12 [0] : vector<16x256xf32> to vector<256xf32>
    %36 = vector.shape_cast %35 : vector<256xf32> to vector<1x256xf32>
    %cst_13 = arith.constant 1.600000e+01 : f32
    %37 = vector.broadcast %cst_13 : f32 to vector<1x256xf32>
    %38 = arith.divf %36, %37 : vector<1x256xf32>
    %cst_14 = arith.constant dense<0xFF800000> : vector<256xf32>
    %39 = vector.multi_reduction <maximumf>, %34, %cst_14 [0] : vector<16x256xf32> to vector<256xf32>
    %40 = vector.shape_cast %39 : vector<256xf32> to vector<1x256xf32>
    %41 = tpu.concatenate %38, %40 in 0 : vector<1x256xf32>, vector<1x256xf32> -> vector<2x256xf32>
    %cst_15 = arith.constant 0.000000e+00 : f32
    %42 = vector.broadcast %cst_15 : f32 to vector<2x256xf32>
    %cst_16 = arith.constant 0.000000e+00 : f32
    %43 = vector.broadcast %cst_16 : f32 to vector<2x256xf32>
    %cst_17 = arith.constant 0.000000e+00 : f32
    %44 = vector.broadcast %cst_17 : f32 to vector<2x256xf32>
    %cst_18 = arith.constant 0.000000e+00 : f32
    %45 = vector.broadcast %cst_18 : f32 to vector<2x256xf32>
    %c51_i32 = arith.constant 51 : i32
    %46 = tpu.dynamic_rotate %41 by %c51_i32 dim 1 : vector<2x256xf32>, i32 -> vector<2x256xf32>
    %c0_19 = arith.constant 0 : index
    %c0_20 = arith.constant 0 : index
    %c0_21 = arith.constant 0 : index
    %47 = vector.load %arg3[%c0_19, %c0_20, %c0_21] : memref<49x2x256xf32, #tpu.memory_space<vmem>>, vector<1x2x256xf32>
    %48 = vector.shape_cast %47 : vector<1x2x256xf32> to vector<2x256xf32>
    %49 = arith.mulf %48, %46 : vector<2x256xf32>
    %50 = arith.addf %42, %49 : vector<2x256xf32>
    %c50_i32 = arith.constant 50 : i32
    %51 = tpu.dynamic_rotate %41 by %c50_i32 dim 1 : vector<2x256xf32>, i32 -> vector<2x256xf32>
    %c1 = arith.constant 1 : index
    %c0_22 = arith.constant 0 : index
    %c0_23 = arith.constant 0 : index
    %52 = vector.load %arg3[%c1, %c0_22, %c0_23] : memref<49x2x256xf32, #tpu.memory_space<vmem>>, vector<1x2x256xf32>
    %53 = vector.shape_cast %52 : vector<1x2x256xf32> to vector<2x256xf32>
    %54 = arith.mulf %53, %51 : vector<2x256xf32>
    %55 = arith.addf %43, %54 : vector<2x256xf32>
    %c49_i32 = arith.constant 49 : i32
    %56 = tpu.dynamic_rotate %41 by %c49_i32 dim 1 : vector<2x256xf32>, i32 -> vector<2x256xf32>
    %c2 = arith.constant 2 : index
    %c0_24 = arith.constant 0 : index
    %c0_25 = arith.constant 0 : index
    %57 = vector.load %arg3[%c2, %c0_24, %c0_25] : memref<49x2x256xf32, #tpu.memory_space<vmem>>, vector<1x2x256xf32>
    %58 = vector.shape_cast %57 : vector<1x2x256xf32> to vector<2x256xf32>
    %59 = arith.mulf %58, %56 : vector<2x256xf32>
    %60 = arith.addf %44, %59 : vector<2x256xf32>
    %c48_i32 = arith.constant 48 : i32
    %61 = tpu.dynamic_rotate %41 by %c48_i32 dim 1 : vector<2x256xf32>, i32 -> vector<2x256xf32>
    %c3 = arith.constant 3 : index
    %c0_26 = arith.constant 0 : index
    %c0_27 = arith.constant 0 : index
    %62 = vector.load %arg3[%c3, %c0_26, %c0_27] : memref<49x2x256xf32, #tpu.memory_space<vmem>>, vector<1x2x256xf32>
    %63 = vector.shape_cast %62 : vector<1x2x256xf32> to vector<2x256xf32>
    %64 = arith.mulf %63, %61 : vector<2x256xf32>
    %65 = arith.addf %45, %64 : vector<2x256xf32>
    %c47_i32 = arith.constant 47 : i32
    %66 = tpu.dynamic_rotate %41 by %c47_i32 dim 1 : vector<2x256xf32>, i32 -> vector<2x256xf32>
    %c4 = arith.constant 4 : index
    %c0_28 = arith.constant 0 : index
    %c0_29 = arith.constant 0 : index
    %67 = vector.load %arg3[%c4, %c0_28, %c0_29] : memref<49x2x256xf32, #tpu.memory_space<vmem>>, vector<1x2x256xf32>
    %68 = vector.shape_cast %67 : vector<1x2x256xf32> to vector<2x256xf32>
    %69 = arith.mulf %68, %66 : vector<2x256xf32>
    %70 = arith.addf %50, %69 : vector<2x256xf32>
    %c46_i32 = arith.constant 46 : i32
    %71 = tpu.dynamic_rotate %41 by %c46_i32 dim 1 : vector<2x256xf32>, i32 -> vector<2x256xf32>
    %c5 = arith.constant 5 : index
    %c0_30 = arith.constant 0 : index
    %c0_31 = arith.constant 0 : index
    %72 = vector.load %arg3[%c5, %c0_30, %c0_31] : memref<49x2x256xf32, #tpu.memory_space<vmem>>, vector<1x2x256xf32>
    %73 = vector.shape_cast %72 : vector<1x2x256xf32> to vector<2x256xf32>
    %74 = arith.mulf %73, %71 : vector<2x256xf32>
    %75 = arith.addf %55, %74 : vector<2x256xf32>
    %c45_i32 = arith.constant 45 : i32
    %76 = tpu.dynamic_rotate %41 by %c45_i32 dim 1 : vector<2x256xf32>, i32 -> vector<2x256xf32>
    %c6 = arith.constant 6 : index
    %c0_32 = arith.constant 0 : index
    %c0_33 = arith.constant 0 : index
    %77 = vector.load %arg3[%c6, %c0_32, %c0_33] : memref<49x2x256xf32, #tpu.memory_space<vmem>>, vector<1x2x256xf32>
    %78 = vector.shape_cast %77 : vector<1x2x256xf32> to vector<2x256xf32>
    %79 = arith.mulf %78, %76 : vector<2x256xf32>
    %80 = arith.addf %60, %79 : vector<2x256xf32>
    %c35_i32 = arith.constant 35 : i32
    %81 = tpu.dynamic_rotate %41 by %c35_i32 dim 1 : vector<2x256xf32>, i32 -> vector<2x256xf32>
    %c7 = arith.constant 7 : index
    %c0_34 = arith.constant 0 : index
    %c0_35 = arith.constant 0 : index
    %82 = vector.load %arg3[%c7, %c0_34, %c0_35] : memref<49x2x256xf32, #tpu.memory_space<vmem>>, vector<1x2x256xf32>
    %83 = vector.shape_cast %82 : vector<1x2x256xf32> to vector<2x256xf32>
    %84 = arith.mulf %83, %81 : vector<2x256xf32>
    %85 = arith.addf %65, %84 : vector<2x256xf32>
    %c34_i32 = arith.constant 34 : i32
    %86 = tpu.dynamic_rotate %41 by %c34_i32 dim 1 : vector<2x256xf32>, i32 -> vector<2x256xf32>
    %c8 = arith.constant 8 : index
    %c0_36 = arith.constant 0 : index
    %c0_37 = arith.constant 0 : index
    %87 = vector.load %arg3[%c8, %c0_36, %c0_37] : memref<49x2x256xf32, #tpu.memory_space<vmem>>, vector<1x2x256xf32>
    %88 = vector.shape_cast %87 : vector<1x2x256xf32> to vector<2x256xf32>
    %89 = arith.mulf %88, %86 : vector<2x256xf32>
    %90 = arith.addf %70, %89 : vector<2x256xf32>
    %c33_i32 = arith.constant 33 : i32
    %91 = tpu.dynamic_rotate %41 by %c33_i32 dim 1 : vector<2x256xf32>, i32 -> vector<2x256xf32>
    %c9 = arith.constant 9 : index
    %c0_38 = arith.constant 0 : index
    %c0_39 = arith.constant 0 : index
    %92 = vector.load %arg3[%c9, %c0_38, %c0_39] : memref<49x2x256xf32, #tpu.memory_space<vmem>>, vector<1x2x256xf32>
    %93 = vector.shape_cast %92 : vector<1x2x256xf32> to vector<2x256xf32>
    %94 = arith.mulf %93, %91 : vector<2x256xf32>
    %95 = arith.addf %75, %94 : vector<2x256xf32>
    %c32_i32 = arith.constant 32 : i32
    %96 = tpu.dynamic_rotate %41 by %c32_i32 dim 1 : vector<2x256xf32>, i32 -> vector<2x256xf32>
    %c10 = arith.constant 10 : index
    %c0_40 = arith.constant 0 : index
    %c0_41 = arith.constant 0 : index
    %97 = vector.load %arg3[%c10, %c0_40, %c0_41] : memref<49x2x256xf32, #tpu.memory_space<vmem>>, vector<1x2x256xf32>
    %98 = vector.shape_cast %97 : vector<1x2x256xf32> to vector<2x256xf32>
    %99 = arith.mulf %98, %96 : vector<2x256xf32>
    %100 = arith.addf %80, %99 : vector<2x256xf32>
    %c31_i32 = arith.constant 31 : i32
    %101 = tpu.dynamic_rotate %41 by %c31_i32 dim 1 : vector<2x256xf32>, i32 -> vector<2x256xf32>
    %c11 = arith.constant 11 : index
    %c0_42 = arith.constant 0 : index
    %c0_43 = arith.constant 0 : index
    %102 = vector.load %arg3[%c11, %c0_42, %c0_43] : memref<49x2x256xf32, #tpu.memory_space<vmem>>, vector<1x2x256xf32>
    %103 = vector.shape_cast %102 : vector<1x2x256xf32> to vector<2x256xf32>
    %104 = arith.mulf %103, %101 : vector<2x256xf32>
    %105 = arith.addf %85, %104 : vector<2x256xf32>
    %c30_i32 = arith.constant 30 : i32
    %106 = tpu.dynamic_rotate %41 by %c30_i32 dim 1 : vector<2x256xf32>, i32 -> vector<2x256xf32>
    %c12 = arith.constant 12 : index
    %c0_44 = arith.constant 0 : index
    %c0_45 = arith.constant 0 : index
    %107 = vector.load %arg3[%c12, %c0_44, %c0_45] : memref<49x2x256xf32, #tpu.memory_space<vmem>>, vector<1x2x256xf32>
    %108 = vector.shape_cast %107 : vector<1x2x256xf32> to vector<2x256xf32>
    %109 = arith.mulf %108, %106 : vector<2x256xf32>
    %110 = arith.addf %90, %109 : vector<2x256xf32>
    %c29_i32 = arith.constant 29 : i32
    %111 = tpu.dynamic_rotate %41 by %c29_i32 dim 1 : vector<2x256xf32>, i32 -> vector<2x256xf32>
    %c13 = arith.constant 13 : index
    %c0_46 = arith.constant 0 : index
    %c0_47 = arith.constant 0 : index
    %112 = vector.load %arg3[%c13, %c0_46, %c0_47] : memref<49x2x256xf32, #tpu.memory_space<vmem>>, vector<1x2x256xf32>
    %113 = vector.shape_cast %112 : vector<1x2x256xf32> to vector<2x256xf32>
    %114 = arith.mulf %113, %111 : vector<2x256xf32>
    %115 = arith.addf %95, %114 : vector<2x256xf32>
    %c19_i32 = arith.constant 19 : i32
    %116 = tpu.dynamic_rotate %41 by %c19_i32 dim 1 : vector<2x256xf32>, i32 -> vector<2x256xf32>
    %c14 = arith.constant 14 : index
    %c0_48 = arith.constant 0 : index
    %c0_49 = arith.constant 0 : index
    %117 = vector.load %arg3[%c14, %c0_48, %c0_49] : memref<49x2x256xf32, #tpu.memory_space<vmem>>, vector<1x2x256xf32>
    %118 = vector.shape_cast %117 : vector<1x2x256xf32> to vector<2x256xf32>
    %119 = arith.mulf %118, %116 : vector<2x256xf32>
    %120 = arith.addf %100, %119 : vector<2x256xf32>
    %c18_i32 = arith.constant 18 : i32
    %121 = tpu.dynamic_rotate %41 by %c18_i32 dim 1 : vector<2x256xf32>, i32 -> vector<2x256xf32>
    %c15 = arith.constant 15 : index
    %c0_50 = arith.constant 0 : index
    %c0_51 = arith.constant 0 : index
    %122 = vector.load %arg3[%c15, %c0_50, %c0_51] : memref<49x2x256xf32, #tpu.memory_space<vmem>>, vector<1x2x256xf32>
    %123 = vector.shape_cast %122 : vector<1x2x256xf32> to vector<2x256xf32>
    %124 = arith.mulf %123, %121 : vector<2x256xf32>
    %125 = arith.addf %105, %124 : vector<2x256xf32>
    %c17_i32 = arith.constant 17 : i32
    %126 = tpu.dynamic_rotate %41 by %c17_i32 dim 1 : vector<2x256xf32>, i32 -> vector<2x256xf32>
    %c16 = arith.constant 16 : index
    %c0_52 = arith.constant 0 : index
    %c0_53 = arith.constant 0 : index
    %127 = vector.load %arg3[%c16, %c0_52, %c0_53] : memref<49x2x256xf32, #tpu.memory_space<vmem>>, vector<1x2x256xf32>
    %128 = vector.shape_cast %127 : vector<1x2x256xf32> to vector<2x256xf32>
    %129 = arith.mulf %128, %126 : vector<2x256xf32>
    %130 = arith.addf %110, %129 : vector<2x256xf32>
    %c16_i32 = arith.constant 16 : i32
    %131 = tpu.dynamic_rotate %41 by %c16_i32 dim 1 : vector<2x256xf32>, i32 -> vector<2x256xf32>
    %c17 = arith.constant 17 : index
    %c0_54 = arith.constant 0 : index
    %c0_55 = arith.constant 0 : index
    %132 = vector.load %arg3[%c17, %c0_54, %c0_55] : memref<49x2x256xf32, #tpu.memory_space<vmem>>, vector<1x2x256xf32>
    %133 = vector.shape_cast %132 : vector<1x2x256xf32> to vector<2x256xf32>
    %134 = arith.mulf %133, %131 : vector<2x256xf32>
    %135 = arith.addf %115, %134 : vector<2x256xf32>
    %c15_i32 = arith.constant 15 : i32
    %136 = tpu.dynamic_rotate %41 by %c15_i32 dim 1 : vector<2x256xf32>, i32 -> vector<2x256xf32>
    %c18 = arith.constant 18 : index
    %c0_56 = arith.constant 0 : index
    %c0_57 = arith.constant 0 : index
    %137 = vector.load %arg3[%c18, %c0_56, %c0_57] : memref<49x2x256xf32, #tpu.memory_space<vmem>>, vector<1x2x256xf32>
    %138 = vector.shape_cast %137 : vector<1x2x256xf32> to vector<2x256xf32>
    %139 = arith.mulf %138, %136 : vector<2x256xf32>
    %140 = arith.addf %120, %139 : vector<2x256xf32>
    %c14_i32 = arith.constant 14 : i32
    %141 = tpu.dynamic_rotate %41 by %c14_i32 dim 1 : vector<2x256xf32>, i32 -> vector<2x256xf32>
    %c19 = arith.constant 19 : index
    %c0_58 = arith.constant 0 : index
    %c0_59 = arith.constant 0 : index
    %142 = vector.load %arg3[%c19, %c0_58, %c0_59] : memref<49x2x256xf32, #tpu.memory_space<vmem>>, vector<1x2x256xf32>
    %143 = vector.shape_cast %142 : vector<1x2x256xf32> to vector<2x256xf32>
    %144 = arith.mulf %143, %141 : vector<2x256xf32>
    %145 = arith.addf %125, %144 : vector<2x256xf32>
    %c13_i32 = arith.constant 13 : i32
    %146 = tpu.dynamic_rotate %41 by %c13_i32 dim 1 : vector<2x256xf32>, i32 -> vector<2x256xf32>
    %c20 = arith.constant 20 : index
    %c0_60 = arith.constant 0 : index
    %c0_61 = arith.constant 0 : index
    %147 = vector.load %arg3[%c20, %c0_60, %c0_61] : memref<49x2x256xf32, #tpu.memory_space<vmem>>, vector<1x2x256xf32>
    %148 = vector.shape_cast %147 : vector<1x2x256xf32> to vector<2x256xf32>
    %149 = arith.mulf %148, %146 : vector<2x256xf32>
    %150 = arith.addf %130, %149 : vector<2x256xf32>
    %c3_i32 = arith.constant 3 : i32
    %151 = tpu.dynamic_rotate %41 by %c3_i32 dim 1 : vector<2x256xf32>, i32 -> vector<2x256xf32>
    %c21 = arith.constant 21 : index
    %c0_62 = arith.constant 0 : index
    %c0_63 = arith.constant 0 : index
    %152 = vector.load %arg3[%c21, %c0_62, %c0_63] : memref<49x2x256xf32, #tpu.memory_space<vmem>>, vector<1x2x256xf32>
    %153 = vector.shape_cast %152 : vector<1x2x256xf32> to vector<2x256xf32>
    %154 = arith.mulf %153, %151 : vector<2x256xf32>
    %155 = arith.addf %135, %154 : vector<2x256xf32>
    %c2_i32 = arith.constant 2 : i32
    %156 = tpu.dynamic_rotate %41 by %c2_i32 dim 1 : vector<2x256xf32>, i32 -> vector<2x256xf32>
    %c22 = arith.constant 22 : index
    %c0_64 = arith.constant 0 : index
    %c0_65 = arith.constant 0 : index
    %157 = vector.load %arg3[%c22, %c0_64, %c0_65] : memref<49x2x256xf32, #tpu.memory_space<vmem>>, vector<1x2x256xf32>
    %158 = vector.shape_cast %157 : vector<1x2x256xf32> to vector<2x256xf32>
    %159 = arith.mulf %158, %156 : vector<2x256xf32>
    %160 = arith.addf %140, %159 : vector<2x256xf32>
    %c1_i32 = arith.constant 1 : i32
    %161 = tpu.dynamic_rotate %41 by %c1_i32 dim 1 : vector<2x256xf32>, i32 -> vector<2x256xf32>
    %c23 = arith.constant 23 : index
    %c0_66 = arith.constant 0 : index
    %c0_67 = arith.constant 0 : index
    %162 = vector.load %arg3[%c23, %c0_66, %c0_67] : memref<49x2x256xf32, #tpu.memory_space<vmem>>, vector<1x2x256xf32>
    %163 = vector.shape_cast %162 : vector<1x2x256xf32> to vector<2x256xf32>
    %164 = arith.mulf %163, %161 : vector<2x256xf32>
    %165 = arith.addf %145, %164 : vector<2x256xf32>
    %c24 = arith.constant 24 : index
    %c0_68 = arith.constant 0 : index
    %c0_69 = arith.constant 0 : index
    %166 = vector.load %arg3[%c24, %c0_68, %c0_69] : memref<49x2x256xf32, #tpu.memory_space<vmem>>, vector<1x2x256xf32>
    %167 = vector.shape_cast %166 : vector<1x2x256xf32> to vector<2x256xf32>
    %168 = arith.mulf %167, %41 : vector<2x256xf32>
    %169 = arith.addf %150, %168 : vector<2x256xf32>
    %c255_i32 = arith.constant 255 : i32
    %170 = tpu.dynamic_rotate %41 by %c255_i32 dim 1 : vector<2x256xf32>, i32 -> vector<2x256xf32>
    %c25 = arith.constant 25 : index
    %c0_70 = arith.constant 0 : index
    %c0_71 = arith.constant 0 : index
    %171 = vector.load %arg3[%c25, %c0_70, %c0_71] : memref<49x2x256xf32, #tpu.memory_space<vmem>>, vector<1x2x256xf32>
    %172 = vector.shape_cast %171 : vector<1x2x256xf32> to vector<2x256xf32>
    %173 = arith.mulf %172, %170 : vector<2x256xf32>
    %174 = arith.addf %155, %173 : vector<2x256xf32>
    %c254_i32 = arith.constant 254 : i32
    %175 = tpu.dynamic_rotate %41 by %c254_i32 dim 1 : vector<2x256xf32>, i32 -> vector<2x256xf32>
    %c26 = arith.constant 26 : index
    %c0_72 = arith.constant 0 : index
    %c0_73 = arith.constant 0 : index
    %176 = vector.load %arg3[%c26, %c0_72, %c0_73] : memref<49x2x256xf32, #tpu.memory_space<vmem>>, vector<1x2x256xf32>
    %177 = vector.shape_cast %176 : vector<1x2x256xf32> to vector<2x256xf32>
    %178 = arith.mulf %177, %175 : vector<2x256xf32>
    %179 = arith.addf %160, %178 : vector<2x256xf32>
    %c253_i32 = arith.constant 253 : i32
    %180 = tpu.dynamic_rotate %41 by %c253_i32 dim 1 : vector<2x256xf32>, i32 -> vector<2x256xf32>
    %c27 = arith.constant 27 : index
    %c0_74 = arith.constant 0 : index
    %c0_75 = arith.constant 0 : index
    %181 = vector.load %arg3[%c27, %c0_74, %c0_75] : memref<49x2x256xf32, #tpu.memory_space<vmem>>, vector<1x2x256xf32>
    %182 = vector.shape_cast %181 : vector<1x2x256xf32> to vector<2x256xf32>
    %183 = arith.mulf %182, %180 : vector<2x256xf32>
    %184 = arith.addf %165, %183 : vector<2x256xf32>
    %c243_i32 = arith.constant 243 : i32
    %185 = tpu.dynamic_rotate %41 by %c243_i32 dim 1 : vector<2x256xf32>, i32 -> vector<2x256xf32>
    %c28 = arith.constant 28 : index
    %c0_76 = arith.constant 0 : index
    %c0_77 = arith.constant 0 : index
    %186 = vector.load %arg3[%c28, %c0_76, %c0_77] : memref<49x2x256xf32, #tpu.memory_space<vmem>>, vector<1x2x256xf32>
    %187 = vector.shape_cast %186 : vector<1x2x256xf32> to vector<2x256xf32>
    %188 = arith.mulf %187, %185 : vector<2x256xf32>
    %189 = arith.addf %169, %188 : vector<2x256xf32>
    %c242_i32 = arith.constant 242 : i32
    %190 = tpu.dynamic_rotate %41 by %c242_i32 dim 1 : vector<2x256xf32>, i32 -> vector<2x256xf32>
    %c29 = arith.constant 29 : index
    %c0_78 = arith.constant 0 : index
    %c0_79 = arith.constant 0 : index
    %191 = vector.load %arg3[%c29, %c0_78, %c0_79] : memref<49x2x256xf32, #tpu.memory_space<vmem>>, vector<1x2x256xf32>
    %192 = vector.shape_cast %191 : vector<1x2x256xf32> to vector<2x256xf32>
    %193 = arith.mulf %192, %190 : vector<2x256xf32>
    %194 = arith.addf %174, %193 : vector<2x256xf32>
    %c241_i32 = arith.constant 241 : i32
    %195 = tpu.dynamic_rotate %41 by %c241_i32 dim 1 : vector<2x256xf32>, i32 -> vector<2x256xf32>
    %c30 = arith.constant 30 : index
    %c0_80 = arith.constant 0 : index
    %c0_81 = arith.constant 0 : index
    %196 = vector.load %arg3[%c30, %c0_80, %c0_81] : memref<49x2x256xf32, #tpu.memory_space<vmem>>, vector<1x2x256xf32>
    %197 = vector.shape_cast %196 : vector<1x2x256xf32> to vector<2x256xf32>
    %198 = arith.mulf %197, %195 : vector<2x256xf32>
    %199 = arith.addf %179, %198 : vector<2x256xf32>
    %c240_i32 = arith.constant 240 : i32
    %200 = tpu.dynamic_rotate %41 by %c240_i32 dim 1 : vector<2x256xf32>, i32 -> vector<2x256xf32>
    %c31 = arith.constant 31 : index
    %c0_82 = arith.constant 0 : index
    %c0_83 = arith.constant 0 : index
    %201 = vector.load %arg3[%c31, %c0_82, %c0_83] : memref<49x2x256xf32, #tpu.memory_space<vmem>>, vector<1x2x256xf32>
    %202 = vector.shape_cast %201 : vector<1x2x256xf32> to vector<2x256xf32>
    %203 = arith.mulf %202, %200 : vector<2x256xf32>
    %204 = arith.addf %184, %203 : vector<2x256xf32>
    %c239_i32 = arith.constant 239 : i32
    %205 = tpu.dynamic_rotate %41 by %c239_i32 dim 1 : vector<2x256xf32>, i32 -> vector<2x256xf32>
    %c32 = arith.constant 32 : index
    %c0_84 = arith.constant 0 : index
    %c0_85 = arith.constant 0 : index
    %206 = vector.load %arg3[%c32, %c0_84, %c0_85] : memref<49x2x256xf32, #tpu.memory_space<vmem>>, vector<1x2x256xf32>
    %207 = vector.shape_cast %206 : vector<1x2x256xf32> to vector<2x256xf32>
    %208 = arith.mulf %207, %205 : vector<2x256xf32>
    %209 = arith.addf %189, %208 : vector<2x256xf32>
    %c238_i32 = arith.constant 238 : i32
    %210 = tpu.dynamic_rotate %41 by %c238_i32 dim 1 : vector<2x256xf32>, i32 -> vector<2x256xf32>
    %c33 = arith.constant 33 : index
    %c0_86 = arith.constant 0 : index
    %c0_87 = arith.constant 0 : index
    %211 = vector.load %arg3[%c33, %c0_86, %c0_87] : memref<49x2x256xf32, #tpu.memory_space<vmem>>, vector<1x2x256xf32>
    %212 = vector.shape_cast %211 : vector<1x2x256xf32> to vector<2x256xf32>
    %213 = arith.mulf %212, %210 : vector<2x256xf32>
    %214 = arith.addf %194, %213 : vector<2x256xf32>
    %c237_i32 = arith.constant 237 : i32
    %215 = tpu.dynamic_rotate %41 by %c237_i32 dim 1 : vector<2x256xf32>, i32 -> vector<2x256xf32>
    %c34 = arith.constant 34 : index
    %c0_88 = arith.constant 0 : index
    %c0_89 = arith.constant 0 : index
    %216 = vector.load %arg3[%c34, %c0_88, %c0_89] : memref<49x2x256xf32, #tpu.memory_space<vmem>>, vector<1x2x256xf32>
    %217 = vector.shape_cast %216 : vector<1x2x256xf32> to vector<2x256xf32>
    %218 = arith.mulf %217, %215 : vector<2x256xf32>
    %219 = arith.addf %199, %218 : vector<2x256xf32>
    %c227_i32 = arith.constant 227 : i32
    %220 = tpu.dynamic_rotate %41 by %c227_i32 dim 1 : vector<2x256xf32>, i32 -> vector<2x256xf32>
    %c35 = arith.constant 35 : index
    %c0_90 = arith.constant 0 : index
    %c0_91 = arith.constant 0 : index
    %221 = vector.load %arg3[%c35, %c0_90, %c0_91] : memref<49x2x256xf32, #tpu.memory_space<vmem>>, vector<1x2x256xf32>
    %222 = vector.shape_cast %221 : vector<1x2x256xf32> to vector<2x256xf32>
    %223 = arith.mulf %222, %220 : vector<2x256xf32>
    %224 = arith.addf %204, %223 : vector<2x256xf32>
    %c226_i32 = arith.constant 226 : i32
    %225 = tpu.dynamic_rotate %41 by %c226_i32 dim 1 : vector<2x256xf32>, i32 -> vector<2x256xf32>
    %c36 = arith.constant 36 : index
    %c0_92 = arith.constant 0 : index
    %c0_93 = arith.constant 0 : index
    %226 = vector.load %arg3[%c36, %c0_92, %c0_93] : memref<49x2x256xf32, #tpu.memory_space<vmem>>, vector<1x2x256xf32>
    %227 = vector.shape_cast %226 : vector<1x2x256xf32> to vector<2x256xf32>
    %228 = arith.mulf %227, %225 : vector<2x256xf32>
    %229 = arith.addf %209, %228 : vector<2x256xf32>
    %c225_i32 = arith.constant 225 : i32
    %230 = tpu.dynamic_rotate %41 by %c225_i32 dim 1 : vector<2x256xf32>, i32 -> vector<2x256xf32>
    %c37 = arith.constant 37 : index
    %c0_94 = arith.constant 0 : index
    %c0_95 = arith.constant 0 : index
    %231 = vector.load %arg3[%c37, %c0_94, %c0_95] : memref<49x2x256xf32, #tpu.memory_space<vmem>>, vector<1x2x256xf32>
    %232 = vector.shape_cast %231 : vector<1x2x256xf32> to vector<2x256xf32>
    %233 = arith.mulf %232, %230 : vector<2x256xf32>
    %234 = arith.addf %214, %233 : vector<2x256xf32>
    %c224_i32 = arith.constant 224 : i32
    %235 = tpu.dynamic_rotate %41 by %c224_i32 dim 1 : vector<2x256xf32>, i32 -> vector<2x256xf32>
    %c38 = arith.constant 38 : index
    %c0_96 = arith.constant 0 : index
    %c0_97 = arith.constant 0 : index
    %236 = vector.load %arg3[%c38, %c0_96, %c0_97] : memref<49x2x256xf32, #tpu.memory_space<vmem>>, vector<1x2x256xf32>
    %237 = vector.shape_cast %236 : vector<1x2x256xf32> to vector<2x256xf32>
    %238 = arith.mulf %237, %235 : vector<2x256xf32>
    %239 = arith.addf %219, %238 : vector<2x256xf32>
    %c223_i32 = arith.constant 223 : i32
    %240 = tpu.dynamic_rotate %41 by %c223_i32 dim 1 : vector<2x256xf32>, i32 -> vector<2x256xf32>
    %c39 = arith.constant 39 : index
    %c0_98 = arith.constant 0 : index
    %c0_99 = arith.constant 0 : index
    %241 = vector.load %arg3[%c39, %c0_98, %c0_99] : memref<49x2x256xf32, #tpu.memory_space<vmem>>, vector<1x2x256xf32>
    %242 = vector.shape_cast %241 : vector<1x2x256xf32> to vector<2x256xf32>
    %243 = arith.mulf %242, %240 : vector<2x256xf32>
    %244 = arith.addf %224, %243 : vector<2x256xf32>
    %c222_i32 = arith.constant 222 : i32
    %245 = tpu.dynamic_rotate %41 by %c222_i32 dim 1 : vector<2x256xf32>, i32 -> vector<2x256xf32>
    %c40 = arith.constant 40 : index
    %c0_100 = arith.constant 0 : index
    %c0_101 = arith.constant 0 : index
    %246 = vector.load %arg3[%c40, %c0_100, %c0_101] : memref<49x2x256xf32, #tpu.memory_space<vmem>>, vector<1x2x256xf32>
    %247 = vector.shape_cast %246 : vector<1x2x256xf32> to vector<2x256xf32>
    %248 = arith.mulf %247, %245 : vector<2x256xf32>
    %249 = arith.addf %229, %248 : vector<2x256xf32>
    %c221_i32 = arith.constant 221 : i32
    %250 = tpu.dynamic_rotate %41 by %c221_i32 dim 1 : vector<2x256xf32>, i32 -> vector<2x256xf32>
    %c41 = arith.constant 41 : index
    %c0_102 = arith.constant 0 : index
    %c0_103 = arith.constant 0 : index
    %251 = vector.load %arg3[%c41, %c0_102, %c0_103] : memref<49x2x256xf32, #tpu.memory_space<vmem>>, vector<1x2x256xf32>
    %252 = vector.shape_cast %251 : vector<1x2x256xf32> to vector<2x256xf32>
    %253 = arith.mulf %252, %250 : vector<2x256xf32>
    %254 = arith.addf %234, %253 : vector<2x256xf32>
    %c211_i32 = arith.constant 211 : i32
    %255 = tpu.dynamic_rotate %41 by %c211_i32 dim 1 : vector<2x256xf32>, i32 -> vector<2x256xf32>
    %c42 = arith.constant 42 : index
    %c0_104 = arith.constant 0 : index
    %c0_105 = arith.constant 0 : index
    %256 = vector.load %arg3[%c42, %c0_104, %c0_105] : memref<49x2x256xf32, #tpu.memory_space<vmem>>, vector<1x2x256xf32>
    %257 = vector.shape_cast %256 : vector<1x2x256xf32> to vector<2x256xf32>
    %258 = arith.mulf %257, %255 : vector<2x256xf32>
    %259 = arith.addf %239, %258 : vector<2x256xf32>
    %c210_i32 = arith.constant 210 : i32
    %260 = tpu.dynamic_rotate %41 by %c210_i32 dim 1 : vector<2x256xf32>, i32 -> vector<2x256xf32>
    %c43 = arith.constant 43 : index
    %c0_106 = arith.constant 0 : index
    %c0_107 = arith.constant 0 : index
    %261 = vector.load %arg3[%c43, %c0_106, %c0_107] : memref<49x2x256xf32, #tpu.memory_space<vmem>>, vector<1x2x256xf32>
    %262 = vector.shape_cast %261 : vector<1x2x256xf32> to vector<2x256xf32>
    %263 = arith.mulf %262, %260 : vector<2x256xf32>
    %264 = arith.addf %244, %263 : vector<2x256xf32>
    %c209_i32 = arith.constant 209 : i32
    %265 = tpu.dynamic_rotate %41 by %c209_i32 dim 1 : vector<2x256xf32>, i32 -> vector<2x256xf32>
    %c44 = arith.constant 44 : index
    %c0_108 = arith.constant 0 : index
    %c0_109 = arith.constant 0 : index
    %266 = vector.load %arg3[%c44, %c0_108, %c0_109] : memref<49x2x256xf32, #tpu.memory_space<vmem>>, vector<1x2x256xf32>
    %267 = vector.shape_cast %266 : vector<1x2x256xf32> to vector<2x256xf32>
    %268 = arith.mulf %267, %265 : vector<2x256xf32>
    %269 = arith.addf %249, %268 : vector<2x256xf32>
    %c208_i32 = arith.constant 208 : i32
    %270 = tpu.dynamic_rotate %41 by %c208_i32 dim 1 : vector<2x256xf32>, i32 -> vector<2x256xf32>
    %c45 = arith.constant 45 : index
    %c0_110 = arith.constant 0 : index
    %c0_111 = arith.constant 0 : index
    %271 = vector.load %arg3[%c45, %c0_110, %c0_111] : memref<49x2x256xf32, #tpu.memory_space<vmem>>, vector<1x2x256xf32>
    %272 = vector.shape_cast %271 : vector<1x2x256xf32> to vector<2x256xf32>
    %273 = arith.mulf %272, %270 : vector<2x256xf32>
    %274 = arith.addf %254, %273 : vector<2x256xf32>
    %c207_i32 = arith.constant 207 : i32
    %275 = tpu.dynamic_rotate %41 by %c207_i32 dim 1 : vector<2x256xf32>, i32 -> vector<2x256xf32>
    %c46 = arith.constant 46 : index
    %c0_112 = arith.constant 0 : index
    %c0_113 = arith.constant 0 : index
    %276 = vector.load %arg3[%c46, %c0_112, %c0_113] : memref<49x2x256xf32, #tpu.memory_space<vmem>>, vector<1x2x256xf32>
    %277 = vector.shape_cast %276 : vector<1x2x256xf32> to vector<2x256xf32>
    %278 = arith.mulf %277, %275 : vector<2x256xf32>
    %279 = arith.addf %259, %278 : vector<2x256xf32>
    %c206_i32 = arith.constant 206 : i32
    %280 = tpu.dynamic_rotate %41 by %c206_i32 dim 1 : vector<2x256xf32>, i32 -> vector<2x256xf32>
    %c47 = arith.constant 47 : index
    %c0_114 = arith.constant 0 : index
    %c0_115 = arith.constant 0 : index
    %281 = vector.load %arg3[%c47, %c0_114, %c0_115] : memref<49x2x256xf32, #tpu.memory_space<vmem>>, vector<1x2x256xf32>
    %282 = vector.shape_cast %281 : vector<1x2x256xf32> to vector<2x256xf32>
    %283 = arith.mulf %282, %280 : vector<2x256xf32>
    %284 = arith.addf %264, %283 : vector<2x256xf32>
    %c205_i32 = arith.constant 205 : i32
    %285 = tpu.dynamic_rotate %41 by %c205_i32 dim 1 : vector<2x256xf32>, i32 -> vector<2x256xf32>
    %c48 = arith.constant 48 : index
    %c0_116 = arith.constant 0 : index
    %c0_117 = arith.constant 0 : index
    %286 = vector.load %arg3[%c48, %c0_116, %c0_117] : memref<49x2x256xf32, #tpu.memory_space<vmem>>, vector<1x2x256xf32>
    %287 = vector.shape_cast %286 : vector<1x2x256xf32> to vector<2x256xf32>
    %288 = arith.mulf %287, %285 : vector<2x256xf32>
    %289 = arith.addf %269, %288 : vector<2x256xf32>
    %290 = arith.addf %289, %274 : vector<2x256xf32>
    %291 = arith.addf %279, %284 : vector<2x256xf32>
    %292 = arith.addf %290, %291 : vector<2x256xf32>
    %cst_118 = arith.constant dense<0.000000e+00> : vector<256xf32>
    %293 = vector.multi_reduction <add>, %292, %cst_118 [0] : vector<2x256xf32> to vector<256xf32>
    %294 = vector.shape_cast %293 : vector<256xf32> to vector<1x256xf32>
    %295 = arith.negf %294 : vector<1x256xf32>
    %296 = math.exp %295 : vector<1x256xf32>
    %cst_119 = arith.constant 1.000000e+00 : f32
    %297 = vector.broadcast %cst_119 : f32 to vector<1x256xf32>
    %298 = arith.addf %297, %296 : vector<1x256xf32>
    %299 = arith.divf %297, %298 : vector<1x256xf32>
    %300 = vector.broadcast %299 : vector<1x256xf32> to vector<16x256xf32>
    %301 = arith.mulf %34, %300 : vector<16x256xf32>
    %c0_120 = arith.constant 0 : index
    %c0_121 = arith.constant 0 : index
    %c0_122 = arith.constant 0 : index
    %302 = vector.load %arg4[%c0_120, %c0_121, %c0_122] : memref<1x16x256xf32, #tpu.memory_space<vmem>>, vector<1x16x256xf32>
    %303 = vector.shape_cast %302 : vector<1x16x256xf32> to vector<16x256xf32>
    %304 = vector.shape_cast %301 : vector<16x256xf32> to vector<1x16x256xf32>
    tpu.vector_store %arg4[%c0_120, %c0_121, %c0_122], %304 {strides = array<i32>} : memref<1x16x256xf32, #tpu.memory_space<vmem>>, vector<1x16x256xf32>,
    return
  }
  func.func @transform_0(%arg0: i32) -> (i32, i32, i32) {
    %c0_i32 = arith.constant 0 : i32
    %c0_i32_0 = arith.constant 0 : i32
    %c0_i32_1 = arith.constant 0 : i32
    return %arg0, %c0_i32, %c0_i32_0 : i32, i32, i32
  }
  func.func @transform_1(%arg0: i32) -> (i32, i32) {
    %c0_i32 = arith.constant 0 : i32
    %c0_i32_0 = arith.constant 0 : i32
    %c0_i32_1 = arith.constant 0 : i32
    return %c0_i32, %c0_i32_0 : i32, i32
  }
  func.func @transform_2(%arg0: i32) -> (i32, i32, i32) {
    %c0_i32 = arith.constant 0 : i32
    %c0_i32_0 = arith.constant 0 : i32
    %c0_i32_1 = arith.constant 0 : i32
    %c0_i32_2 = arith.constant 0 : i32
    return %c0_i32, %c0_i32_0, %c0_i32_1 : i32, i32, i32
  }
  func.func @transform_3(%arg0: i32) -> (i32, i32, i32) {
    %c0_i32 = arith.constant 0 : i32
    %c0_i32_0 = arith.constant 0 : i32
    %c0_i32_1 = arith.constant 0 : i32
    return %arg0, %c0_i32, %c0_i32_0 : i32, i32, i32
  }
}

</mosaic_0001>

<llo_original>
// kernel: tpu_custom_call.1
$region0: #{tpu_custom_call.1}
  #allocation0 [shape = 'u32[]', space=smem, size = 0x4, offset = 0x4, fixed_abs, tag = 'smem constant byte address 0x4 - core index']
  #allocation1 [shape = 'u32[144,128]{1,0:T(1,128)}', space=vmem, size = 0x12000, scoped, tag = 'internal scratch']
  %s0 = inlined_call_operand.hbm [shape: f32[2,16,256], index: 0, kind: input, shape index: {}]
  %s1 = inlined_call_operand.vmem [shape: f32[16,4], index: 1, kind: input, shape index: {}]
  %s2 = inlined_call_operand.hbm [shape: f32[49,2,256], index: 2, kind: input, shape index: {}]
  %s3 = inlined_call_operand.hbm [shape: f32[2,16,256], index: 3, kind: output, shape index: {}]
  %s4 = sld [smem:[#allocation0]]
  $region53: #{tpu_custom_call.1} parent=0
    _
  %s6 = ssub.s32 1, %s4
  %s7 = scalar_select 0, %s6, %s4
  $region1: #{tpu_custom_call.1} parent=0
    #allocation2 [shape = 'u8[32768]{0}', space=vmem, size = 0x8000, scoped, tag = 'input window, operand 0']
    #allocation3 [shape = 's32[2]{0}', space=sflag, size = 0x8, scoped, tag = 'scoped memory for tpu_custom_call.1']
    #allocation4 [shape = 's32[2]{0}', space=sflag, size = 0x8, scoped, tag = 'scoped memory for tpu_custom_call.1']
    #allocation5 [shape = 'u8[100352]{0}', space=vmem, size = 0x18800, scoped, tag = 'input window, operand 2, single buffered']
    #allocation6 [shape = 's32[1]{0}', space=sflag, size = 0x4, scoped, tag = 'scoped memory for tpu_custom_call.1']
    #allocation7 [shape = 'u8[32768]{0}', space=vmem, size = 0x8000, scoped, tag = 'output window, operand 0']
    %8 = vsyncpa [#allocation3], 0
    %s9 = scalar_lea.sflag [#allocation3], 1
    %10 = vsyncpa %s9, 0
    %11 = vsyncpa [#allocation6], 0
    %12 = vsyncpa [#allocation4], 0
    %s13 = scalar_lea.sflag [#allocation4], 1
    %14 = vsyncpa %s13, 0
    loop: start=0, step=1, limit=4
    $region2: #{tpu_custom_call.1} parent=1 // loop_pre_header
      _
    $region3: #{tpu_custom_call.1} parent=1 // loop_header
      %s16 = sphi 0, %s20
      %p17 = scmp.ge.s32.totalorder %s16, 4
      %s26 = sphi 0, %s28
      %s29 = sphi 0, %s26
      %s30 = sphi 0, %s29
      %s46 = sphi 0, %s30
      %s50 = sphi 0, %s50
      %s52 = sphi 0, %s50
      %s53 = sphi 0, %s52
      %s67 = sphi 0, %s53
      %s71 = sphi 0, %s71
      %s73 = sphi 0, %s71
      %s74 = sphi 0, %s73
      %s88 = sphi 0, %s74
      %s94 = sphi 0, %s96
      %s97 = sphi 0, %s94
      %s98 = sphi 0, %s97
      %s114 = sphi 0, %s98
    $region4: #{tpu_custom_call.1} parent=1 // loop_header_branch
      %19 = sbr.rel (%p17) target = $region8
    $region5: #{tpu_custom_call.1} parent=1 // loop_body
      %s21 = ssub.s32 %s16, 1
      %s22 = ssub.s32 %s16, 2
      %s23 = sadd.s32 %s16, 1
      %s24 = ssub.s32 %s16, %s23
      %p25 = scmp.eq.s32.totalorder %s24, 0
      %s27 = sadd.s32 %s26, 1
      %s28 = scalar_select %p25, %s26, %s27
      %p31 = pneg %p25
      %p32 = scmp.eq.s32.totalorder %s16, 1
      %p33 = por %p31, %p32
      %p34 = scmp.ne.s32.totalorder %s26, %s29
      %p35 = scmp.eq.s32.totalorder %s16, 0
      %p36 = por %p34, %p35
      %p37 = scmp.ne.s32.totalorder %s26, %s29
      %p38 = scmp.eq.s32.totalorder %s21, 1
      %p39 = por %p37, %p38
      %p40 = scmp.ne.s32.totalorder %s29, %s30
      %p41 = scmp.eq.s32.totalorder %s21, 0
      %p42 = por %p40, %p41
      %p43 = scmp.ne.s32.totalorder %s29, %s30
      %p44 = scmp.eq.s32.totalorder %s22, 1
      %p45 = por %p43, %p44
      %p47 = scmp.ne.s32.totalorder %s30, %s46
      %p48 = scmp.eq.s32.totalorder %s22, 0
      %p49 = por %p47, %p48
      %s51 = sadd.s32 %s50, 1
      %p54 = scmp.eq.s32.totalorder %s16, 1
      %p55 = scmp.ne.s32.totalorder %s50, %s52
      %p56 = scmp.eq.s32.totalorder %s16, 0
      %p57 = por %p55, %p56
      %p58 = scmp.ne.s32.totalorder %s50, %s52
      %p59 = scmp.eq.s32.totalorder %s21, 1
      %p60 = por %p58, %p59
      %p61 = scmp.ne.s32.totalorder %s52, %s53
      %p62 = scmp.eq.s32.totalorder %s21, 0
      %p63 = por %p61, %p62
      %p64 = scmp.ne.s32.totalorder %s52, %s53
      %p65 = scmp.eq.s32.totalorder %s22, 1
      %p66 = por %p64, %p65
      %p68 = scmp.ne.s32.totalorder %s53, %s67
      %p69 = scmp.eq.s32.totalorder %s22, 0
      %p70 = por %p68, %p69
      %s72 = sadd.s32 %s71, 1
      %p75 = scmp.eq.s32.totalorder %s16, 1
      %p76 = scmp.ne.s32.totalorder %s71, %s73
      %p77 = scmp.eq.s32.totalorder %s16, 0
      %p78 = por %p76, %p77
      %p79 = scmp.ne.s32.totalorder %s71, %s73
      %p80 = scmp.eq.s32.totalorder %s21, 1
      %p81 = por %p79, %p80
      %p82 = scmp.ne.s32.totalorder %s73, %s74
      %p83 = scmp.eq.s32.totalorder %s21, 0
      %p84 = por %p82, %p83
      %p85 = scmp.ne.s32.totalorder %s73, %s74
      %p86 = scmp.eq.s32.totalorder %s22, 1
      %p87 = por %p85, %p86
      %p89 = scmp.ne.s32.totalorder %s74, %s88
      %p90 = scmp.eq.s32.totalorder %s22, 0
      %p91 = por %p89, %p90
      %s92 = ssub.s32 %s16, %s23
      %p93 = scmp.eq.s32.totalorder %s92, 0
      %s95 = sadd.s32 %s94, 1
      %s96 = scalar_select %p93, %s94, %s95
      %p99 = pneg %p93
      %p100 = scmp.eq.s32.totalorder %s16, 1
      %p101 = por %p99, %p100
      %p102 = scmp.ne.s32.totalorder %s94, %s97
      %p103 = scmp.eq.s32.totalorder %s16, 0
      %p104 = por %p102, %p103
      %p105 = scmp.ne.s32.totalorder %s94, %s97
      %p106 = scmp.eq.s32.totalorder %s21, 1
      %p107 = por %p105, %p106
      %p108 = scmp.ne.s32.totalorder %s97, %s98
      %p109 = scmp.eq.s32.totalorder %s21, 0
      %p110 = por %p108, %p109
      %p111 = scmp.ne.s32.totalorder %s97, %s98
      %p112 = scmp.eq.s32.totalorder %s22, 1
      %p113 = por %p111, %p112
      %p115 = scmp.ne.s32.totalorder %s98, %s114
      %p116 = scmp.eq.s32.totalorder %s22, 0
      %p117 = por %p115, %p116
      %p118 = scmp.le.s32.totalorder 1, %s16
      %p119 = scmp.lt.s32.totalorder %s16, 3
      %p120 = pnand %p118, %p119
      %p121 = pneg %p120
      // Predicated region
      $region9: #{tpu_custom_call.1} parent=5 // pred_check
        _
      $region10: #{tpu_custom_call.1} parent=5 // pred_check_branch
        %123 = sbr.rel (%p120) target = $region12
      $region11: #{tpu_custom_call.1} parent=5 // pred_region
        %s124 = ssub.s32 %s16, 1
        // Predicated region
        $region13: #{tpu_custom_call.1} parent=11 // pred_check
          %p125 = pneg %p63
        $region14: #{tpu_custom_call.1} parent=11 // pred_check_branch
          %127 = sbr.rel (%p125) target = $region16
        $region15: #{tpu_custom_call.1} parent=11 // pred_region
          _
        $region16: #{tpu_custom_call.1} parent=11 // pred_fallthru
          _
        // Predicated region
        $region17: #{tpu_custom_call.1} parent=11 // pred_check
          %p128 = pneg %p84
        $region18: #{tpu_custom_call.1} parent=11 // pred_check_branch
          %130 = sbr.rel (%p128) target = $region20
        $region19: #{tpu_custom_call.1} parent=11 // pred_region
          %s132 = ssub.s32 3136, 3136
          %133 = vsyncadd [#allocation6], %s132
          %s134 = sshll.u32 [#allocation5], 4
          %s135 = int_to_ptr.vmem [resolvable:$true] %s134
          %140 = dma.hbm_to_vmem [thread:$0]  %s2, 3136, %s135, [#allocation6], 64, 64, 4
        $region20: #{tpu_custom_call.1} parent=11 // pred_fallthru
          _
      $region12: #{tpu_custom_call.1} parent=5 // pred_fallthru
        _
      %p141 = scmp.lt.s32.totalorder %s16, 2
      // Predicated region
      $region21: #{tpu_custom_call.1} parent=5 // pred_check
        %p142 = pneg %p141
      $region22: #{tpu_custom_call.1} parent=5 // pred_check_branch
        %144 = sbr.rel (%p142) target = $region24
      $region23: #{tpu_custom_call.1} parent=5 // pred_region
        // Predicated region
        $region25: #{tpu_custom_call.1} parent=23 // pred_check
          %p145 = pneg %p36
        $region26: #{tpu_custom_call.1} parent=23 // pred_check_branch
          %147 = sbr.rel (%p145) target = $region28
        $region27: #{tpu_custom_call.1} parent=23 // pred_region
          %s148 = sand.u32 %s26, 1
          %s149 = scalar_lea.sflag [#allocation3], %s148
          %s150 = sand.u32 %s26, 1
          %s151 = smul.addr %s150, 32
          %s152 = scalar_lea.vmem [#allocation2], %s151
          %s154 = ssub.s32 512, 512
          %155 = vsyncadd %s149, %s154
          %s156 = smul.addr %s16, 4
          %s157 = smul.addr %s156, 128
          %s158 = scalar_lea.hbm %s0, %s157
          %s159 = sshll.u32 %s152, 4
          %s160 = int_to_ptr.vmem [resolvable:$true] %s159
          %165 = dma.hbm_to_vmem [thread:$0]  %s158, 512, %s160, %s149, 256, 256, 16
        $region28: #{tpu_custom_call.1} parent=23 // pred_fallthru
          _
      $region24: #{tpu_custom_call.1} parent=5 // pred_fallthru
        _
      %p166 = scmp.le.s32.totalorder 1, %s16
      %p167 = scmp.lt.s32.totalorder %s16, 3
      %p168 = pnand %p166, %p167
      %p169 = pneg %p168
      // Predicated region
      $region29: #{tpu_custom_call.1} parent=5 // pred_check
        _
      $region30: #{tpu_custom_call.1} parent=5 // pred_check_branch
        %171 = sbr.rel (%p168) target = $region32
      $region31: #{tpu_custom_call.1} parent=5 // pred_region
        %s172 = ssub.s32 %s16, 1
        %s173 = sand.u32 %s29, 1
        %s174 = scalar_lea.sflag [#allocation3], %s173
        %s175 = sand.u32 %s29, 1
        %s176 = smul.addr %s175, 32
        %s177 = scalar_lea.vmem [#allocation2], %s176
        // Predicated region
        $region33: #{tpu_custom_call.1} parent=31 // pred_check
          %p178 = pneg %p42
        $region34: #{tpu_custom_call.1} parent=31 // pred_check_branch
          %180 = sbr.rel (%p178) target = $region36
        $region35: #{tpu_custom_call.1} parent=31 // pred_region
          %181 = dma.done %s174, 512
        $region36: #{tpu_custom_call.1} parent=31 // pred_fallthru
          _
        // Predicated region
        $region37: #{tpu_custom_call.1} parent=31 // pred_check
          %p182 = pneg %p84
        $region38: #{tpu_custom_call.1} parent=31 // pred_check_branch
          %184 = sbr.rel (%p182) target = $region40
        $region39: #{tpu_custom_call.1} parent=31 // pred_region
          %185 = dma.done [#allocation6], 3136
        $region40: #{tpu_custom_call.1} parent=31 // pred_fallthru
          _
        %s186 = sand.u32 %s29, 1
        %s187 = scalar_lea.sflag [#allocation3], %s186
        %s188 = sand.u32 %s29, 1
        %s189 = smul.addr %s188, 32
        %s190 = scalar_lea.vmem [#allocation2], %s189
        %p191 = pneg %p42
        %p192 = pneg %p39
        %p193 = pneg %p63
        %p194 = pneg %p60
        %p195 = pneg %p84
        %p196 = pneg %p81
        %p197 = pneg %p110
        %p198 = pneg %p107
        %s199 = sand.u32 %s97, 1
        %s200 = scalar_lea.sflag [#allocation4], %s199
        %s201 = sand.u32 %s97, 1
        %s202 = smul.addr %s201, 32
        %s203 = scalar_lea.vmem [#allocation7], %s202
        %v204 = vld [vmem:[%s1] sm:$0xff]
        %v205 = vld [vmem:[%s1 + $0x8] sm:$0xff]
        %v206 = vld [vmem:[%s177] sm:$0xff]
        %v207 = vld [vmem:[%s177 + $0x8] sm:$0xff]
        %v208 = vld [vmem:[%s177 + $0x10] sm:$0xff]
        %v209 = vld [vmem:[%s177 + $0x18] sm:$0xff]
        %v210 = vadd.f32 %v206, %v207
        %211 = vadd.xlane.f32.xlu0 %v210
        %v212 = vpop.xlane.xlu0 %211
        %v213 = vadd.f32 %v208, %v209
        %214 = vadd.xlane.f32.xlu0 %v213
        %v215 = vpop.xlane.xlu0 %214
        %v216 = vrcp.pop 256.0
        %v217 = vmul.f32 %v212, %v216
        %v218 = vmul.f32 %v215, %v216
        %v219 = vmax.f32 %v206, %v207
        %220 = vmax.xlane.f32.xlu0 %v219
        %v221 = vpop.xlane.xlu0 %220
        %v222 = vmax.f32 %v208, %v209
        %223 = vmax.xlane.f32.xlu0 %v222
        %v224 = vpop.xlane.xlu0 %223
        %v225 = vmul.f32 %v204, %v217
        %v226 = vmul.f32 %v205, %v218
        %vm227 = vcmask 15360
        %v228 = vsel %vm227, %v225, 0.0
        %v229 = vsel %vm227, %v226, 0.0
        %v230 = vadd.f32 %v228, %v229
        %v231 = vrot.slane %v230, 4
        %v232 = vadd.f32 %v230, %v231
        %v233 = vrot.slane %v232, 2
        %v234 = vadd.f32 %v232, %v233
        %v235 = vrot.slane %v234, 1
        %v236 = vadd.f32 %v234, %v235
        %v237 = vmax.f32 %v236, 0.0
        %v238 = vmul.f32 %v204, %v221
        %v239 = vmul.f32 %v205, %v224
        %v240 = vsel %vm227, %v238, 0.0
        %v241 = vsel %vm227, %v239, 0.0
        %v242 = vadd.f32 %v240, %v241
        %v243 = vrot.slane %v242, 4
        %v244 = vadd.f32 %v242, %v243
        %v245 = vrot.slane %v244, 2
        %v246 = vadd.f32 %v244, %v245
        %v247 = vrot.slane %v246, 1
        %v248 = vadd.f32 %v246, %v247
        %v249 = vmax.f32 %v248, 0.0
        %v250 = vadd.f32 %v237, %v249
        %252 = vrot.lane.b32.xlu0 %v250, 2
        %v253 = vpop.permute.xlu0 %252
        %v255 = vmul.f32 %v204, %v253
        %v256 = vmul.f32 %v205, %v253
        %259 = vrot.lane.b32.xlu0 %v255, 126
        %v260 = vpop.permute.xlu0 %259
        %261 = vrot.lane.b32.xlu0 %v256, 126
        %v262 = vpop.permute.xlu0 %261
        %v265 = vsel %vm227, %v260, 0.0
        %266 = vadd.xlane.f32.xlu0 %v265
        %v267 = vpop.xlane.xlu0 %266
        %v268 = vsel %vm227, %v262, 0.0
        %269 = vadd.xlane.f32.xlu0 %v268
        %v270 = vpop.xlane.xlu0 %269
        %v271 = vxor.u32 %v267, 2147483648
        %v272 = vxor.u32 %v270, 2147483648
        %v273 = vmul.f32 %v271, 1.442695
        %v274 = vpow.pop %v273
        %v275 = vmul.f32 %v272, 1.442695
        %v276 = vpow.pop %v275
        %v277 = vadd.f32 %v274, 1.0
        %v278 = vadd.f32 %v276, 1.0
        %v279 = vrcp.pop %v277
        %v280 = vmul.f32 1.0, %v279
        %v281 = vrcp.pop %v278
        %v282 = vmul.f32 1.0, %v281
        %v283 = vmul.f32 %v206, %v280
        %v284 = vmul.f32 %v207, %v280
        %v285 = vmul.f32 %v208, %v282
        %v286 = vmul.f32 %v209, %v282
        %v287 = vadd.f32 %v283, %v285
        %v288 = vrot.slane %v287, 4
        %v289 = vadd.f32 %v287, %v288
        %v290 = vrot.slane %v289, 2
        %v291 = vadd.f32 %v289, %v290
        %v292 = vrot.slane %v291, 1
        %v293 = vadd.f32 %v291, %v292
        %v294 = vadd.f32 %v284, %v286
        %v295 = vrot.slane %v294, 4
        %v296 = vadd.f32 %v294, %v295
        %v297 = vrot.slane %v296, 2
        %v298 = vadd.f32 %v296, %v297
        %v299 = vrot.slane %v298, 1
        %v300 = vadd.f32 %v298, %v299
        %v301 = vrcp.pop 16.0
        %v302 = vmul.f32 %v293, %v301
        %v303 = vmul.f32 %v300, %v301
        %v304 = vmax.f32 %v283, %v285
        %v305 = vrot.slane %v304, 4
        %v306 = vmax.f32 %v304, %v305
        %v307 = vrot.slane %v306, 2
        %v308 = vmax.f32 %v306, %v307
        %v309 = vrot.slane %v308, 1
        %v310 = vmax.f32 %v308, %v309
        %v311 = vmax.f32 %v284, %v286
        %v312 = vrot.slane %v311, 4
        %v313 = vmax.f32 %v311, %v312
        %v314 = vrot.slane %v313, 2
        %v315 = vmax.f32 %v313, %v314
        %v316 = vrot.slane %v315, 1
        %v317 = vmax.f32 %v315, %v316
        %vm318 = vcmask 1040384
        %v319 = vsel %vm318, %v302, %v310
        %v320 = vsel %vm318, %v303, %v317
        %321 = vrot.lane.b32.xlu0 %v319, 51
        %v322 = vpop.permute.xlu0 %321
        %323 = vrot.lane.b32.xlu0 %v320, 51
        %v324 = vpop.permute.xlu0 %323
        %v325 = vlaneseq
        %v326 = vand.u32 %v325, 127
        %vm327 = vcmp.lt.s32.totalorder %v326, 51
        %v328 = vsel %vm327, %v322, %v324
        %v329 = vsel %vm327, %v324, %v322
        %v330 = vld [vmem:[#allocation5] sm:$0xf]
        %v333 = vcombine.low %v329, %v328
        %v335 = vunpack.c.l.s4 1983009808
        %v336 = vunpack.c.0.s8 %v335
        %v337 = vlaneseq
        %v338 = vshrl.u32 %v337, 7
        %v339 = vsub.s32 %v336, %v338
        %v340 = vrot.slane %v333, %v339
        %v342 = vmul.f32 %v330, %v340
        %v343 = vadd.f32 %v342, 0.0
        %344 = vrot.lane.b32.xlu0 %v319, 50
        %v345 = vpop.permute.xlu0 %344
        %346 = vrot.lane.b32.xlu0 %v320, 50
        %v347 = vpop.permute.xlu0 %346
        %vm348 = vcmp.lt.s32.totalorder %v326, 50
        %v349 = vsel %vm348, %v345, %v347
        %v350 = vsel %vm348, %v347, %v345
        %s351 = scalar_lea.vmem [#allocation5], 4
        %v352 = vld [vmem:[%s351] sm:$0xf]
        %v355 = vcombine.low %v350, %v349
        %v357 = vunpack.c.l.s4 1983009808
        %v358 = vunpack.c.0.s8 %v357
        %v359 = vlaneseq
        %v360 = vshrl.u32 %v359, 7
        %v361 = vsub.s32 %v358, %v360
        %v362 = vrot.slane %v355, %v361
        %v364 = vmul.f32 %v352, %v362
        %v365 = vadd.f32 %v364, 0.0
        %366 = vrot.lane.b32.xlu0 %v319, 49
        %v367 = vpop.permute.xlu0 %366
        %368 = vrot.lane.b32.xlu0 %v320, 49
        %v369 = vpop.permute.xlu0 %368
        %vm370 = vcmp.lt.s32.totalorder %v326, 49
        %v371 = vsel %vm370, %v367, %v369
        %v372 = vsel %vm370, %v369, %v367
        %s373 = scalar_lea.vmem [#allocation5], 8
        %v374 = vld [vmem:[%s373] sm:$0xf]
        %v377 = vcombine.low %v372, %v371
        %v379 = vunpack.c.l.s4 1983009808
        %v380 = vunpack.c.0.s8 %v379
        %v381 = vlaneseq
        %v382 = vshrl.u32 %v381, 7
        %v383 = vsub.s32 %v380, %v382
        %v384 = vrot.slane %v377, %v383
        %v386 = vmul.f32 %v374, %v384
        %v387 = vadd.f32 %v386, 0.0
        %388 = vrot.lane.b32.xlu0 %v319, 48
        %v389 = vpop.permute.xlu0 %388
        %390 = vrot.lane.b32.xlu0 %v320, 48
        %v391 = vpop.permute.xlu0 %390
        %vm392 = vcmp.lt.s32.totalorder %v326, 48
        %v393 = vsel %vm392, %v389, %v391
        %v394 = vsel %vm392, %v391, %v389
        %s395 = scalar_lea.vmem [#allocation5], 12
        %v396 = vld [vmem:[%s395] sm:$0xf]
        %v399 = vcombine.low %v394, %v393
        %v401 = vunpack.c.l.s4 1983009808
        %v402 = vunpack.c.0.s8 %v401
        %v403 = vlaneseq
        %v404 = vshrl.u32 %v403, 7
        %v405 = vsub.s32 %v402, %v404
        %v406 = vrot.slane %v399, %v405
        %v408 = vmul.f32 %v396, %v406
        %v409 = vadd.f32 %v408, 0.0
        %410 = vrot.lane.b32.xlu0 %v319, 47
        %v411 = vpop.permute.xlu0 %410
        %412 = vrot.lane.b32.xlu0 %v320, 47
        %v413 = vpop.permute.xlu0 %412
        %vm414 = vcmp.lt.s32.totalorder %v326, 47
        %v415 = vsel %vm414, %v411, %v413
        %v416 = vsel %vm414, %v413, %v411
        %s417 = scalar_lea.vmem [#allocation5], 16
        %v418 = vld [vmem:[%s417] sm:$0xf]
        %v421 = vcombine.low %v416, %v415
        %v423 = vunpack.c.l.s4 1983009808
        %v424 = vunpack.c.0.s8 %v423
        %v425 = vlaneseq
        %v426 = vshrl.u32 %v425, 7
        %v427 = vsub.s32 %v424, %v426
        %v428 = vrot.slane %v421, %v427
        %v430 = vmul.f32 %v418, %v428
        %v431 = vadd.f32 %v343, %v430
        %432 = vrot.lane.b32.xlu0 %v319, 46
        %v433 = vpop.permute.xlu0 %432
        %434 = vrot.lane.b32.xlu0 %v320, 46
        %v435 = vpop.permute.xlu0 %434
        %vm436 = vcmp.lt.s32.totalorder %v326, 46
        %v437 = vsel %vm436, %v433, %v435
        %v438 = vsel %vm436, %v435, %v433
        %s439 = scalar_lea.vmem [#allocation5], 20
        %v440 = vld [vmem:[%s439] sm:$0xf]
        %v443 = vcombine.low %v438, %v437
        %v445 = vunpack.c.l.s4 1983009808
        %v446 = vunpack.c.0.s8 %v445
        %v447 = vlaneseq
        %v448 = vshrl.u32 %v447, 7
        %v449 = vsub.s32 %v446, %v448
        %v450 = vrot.slane %v443, %v449
        %v452 = vmul.f32 %v440, %v450
        %v453 = vadd.f32 %v365, %v452
        %454 = vrot.lane.b32.xlu0 %v319, 45
        %v455 = vpop.permute.xlu0 %454
        %456 = vrot.lane.b32.xlu0 %v320, 45
        %v457 = vpop.permute.xlu0 %456
        %vm458 = vcmp.lt.s32.totalorder %v326, 45
        %v459 = vsel %vm458, %v455, %v457
        %v460 = vsel %vm458, %v457, %v455
        %s461 = scalar_lea.vmem [#allocation5], 24
        %v462 = vld [vmem:[%s461] sm:$0xf]
        %v465 = vcombine.low %v460, %v459
        %v467 = vunpack.c.l.s4 1983009808
        %v468 = vunpack.c.0.s8 %v467
        %v469 = vlaneseq
        %v470 = vshrl.u32 %v469, 7
        %v471 = vsub.s32 %v468, %v470
        %v472 = vrot.slane %v465, %v471
        %v474 = vmul.f32 %v462, %v472
        %v475 = vadd.f32 %v387, %v474
        %476 = vrot.lane.b32.xlu0 %v319, 35
        %v477 = vpop.permute.xlu0 %476
        %478 = vrot.lane.b32.xlu0 %v320, 35
        %v479 = vpop.permute.xlu0 %478
        %vm480 = vcmp.lt.s32.totalorder %v326, 35
        %v481 = vsel %vm480, %v477, %v479
        %v482 = vsel %vm480, %v479, %v477
        %s483 = scalar_lea.vmem [#allocation5], 28
        %v484 = vld [vmem:[%s483] sm:$0xf]
        %v487 = vcombine.low %v482, %v481
        %v489 = vunpack.c.l.s4 1983009808
        %v490 = vunpack.c.0.s8 %v489
        %v491 = vlaneseq
        %v492 = vshrl.u32 %v491, 7
        %v493 = vsub.s32 %v490, %v492
        %v494 = vrot.slane %v487, %v493
        %v496 = vmul.f32 %v484, %v494
        %v497 = vadd.f32 %v409, %v496
        %498 = vrot.lane.b32.xlu0 %v319, 34
        %v499 = vpop.permute.xlu0 %498
        %500 = vrot.lane.b32.xlu0 %v320, 34
        %v501 = vpop.permute.xlu0 %500
        %vm502 = vcmp.lt.s32.totalorder %v326, 34
        %v503 = vsel %vm502, %v499, %v501
        %v504 = vsel %vm502, %v501, %v499
        %s505 = scalar_lea.vmem [#allocation5], 32
        %v506 = vld [vmem:[%s505] sm:$0xf]
        %v509 = vcombine.low %v504, %v503
        %v511 = vunpack.c.l.s4 1983009808
        %v512 = vunpack.c.0.s8 %v511
        %v513 = vlaneseq
        %v514 = vshrl.u32 %v513, 7
        %v515 = vsub.s32 %v512, %v514
        %v516 = vrot.slane %v509, %v515
        %v518 = vmul.f32 %v506, %v516
        %v519 = vadd.f32 %v431, %v518
        %520 = vrot.lane.b32.xlu0 %v319, 33
        %v521 = vpop.permute.xlu0 %520
        %522 = vrot.lane.b32.xlu0 %v320, 33
        %v523 = vpop.permute.xlu0 %522
        %vm524 = vcmp.lt.s32.totalorder %v326, 33
        %v525 = vsel %vm524, %v521, %v523
        %v526 = vsel %vm524, %v523, %v521
        %s527 = scalar_lea.vmem [#allocation5], 36
        %v528 = vld [vmem:[%s527] sm:$0xf]
        %v531 = vcombine.low %v526, %v525
        %v533 = vunpack.c.l.s4 1983009808
        %v534 = vunpack.c.0.s8 %v533
        %v535 = vlaneseq
        %v536 = vshrl.u32 %v535, 7
        %v537 = vsub.s32 %v534, %v536
        %v538 = vrot.slane %v531, %v537
        %v540 = vmul.f32 %v528, %v538
        %v541 = vadd.f32 %v453, %v540
        %542 = vrot.lane.b32.xlu0 %v319, 32
        %v543 = vpop.permute.xlu0 %542
        %544 = vrot.lane.b32.xlu0 %v320, 32
        %v545 = vpop.permute.xlu0 %544
        %vm546 = vcmp.lt.s32.totalorder %v326, 32
        %v547 = vsel %vm546, %v543, %v545
        %v548 = vsel %vm546, %v545, %v543
        %s549 = scalar_lea.vmem [#allocation5], 40
        %v550 = vld [vmem:[%s549] sm:$0xf]
        %v553 = vcombine.low %v548, %v547
        %v555 = vunpack.c.l.s4 1983009808
        %v556 = vunpack.c.0.s8 %v555
        %v557 = vlaneseq
        %v558 = vshrl.u32 %v557, 7
        %v559 = vsub.s32 %v556, %v558
        %v560 = vrot.slane %v553, %v559
        %v562 = vmul.f32 %v550, %v560
        %v563 = vadd.f32 %v475, %v562
        %564 = vrot.lane.b32.xlu0 %v319, 31
        %v565 = vpop.permute.xlu0 %564
        %566 = vrot.lane.b32.xlu0 %v320, 31
        %v567 = vpop.permute.xlu0 %566
        %vm568 = vcmp.lt.s32.totalorder %v326, 31
        %v569 = vsel %vm568, %v565, %v567
        %v570 = vsel %vm568, %v567, %v565
        %s571 = scalar_lea.vmem [#allocation5], 44
        %v572 = vld [vmem:[%s571] sm:$0xf]
        %v575 = vcombine.low %v570, %v569
        %v577 = vunpack.c.l.s4 1983009808
        %v578 = vunpack.c.0.s8 %v577
        %v579 = vlaneseq
        %v580 = vshrl.u32 %v579, 7
        %v581 = vsub.s32 %v578, %v580
        %v582 = vrot.slane %v575, %v581
        %v584 = vmul.f32 %v572, %v582
        %v585 = vadd.f32 %v497, %v584
        %586 = vrot.lane.b32.xlu0 %v319, 30
        %v587 = vpop.permute.xlu0 %586
        %588 = vrot.lane.b32.xlu0 %v320, 30
        %v589 = vpop.permute.xlu0 %588
        %vm590 = vcmp.lt.s32.totalorder %v326, 30
        %v591 = vsel %vm590, %v587, %v589
        %v592 = vsel %vm590, %v589, %v587
        %s593 = scalar_lea.vmem [#allocation5], 48
        %v594 = vld [vmem:[%s593] sm:$0xf]
        %v597 = vcombine.low %v592, %v591
        %v599 = vunpack.c.l.s4 1983009808
        %v600 = vunpack.c.0.s8 %v599
        %v601 = vlaneseq
        %v602 = vshrl.u32 %v601, 7
        %v603 = vsub.s32 %v600, %v602
        %v604 = vrot.slane %v597, %v603
        %v606 = vmul.f32 %v594, %v604
        %v607 = vadd.f32 %v519, %v606
        %608 = vrot.lane.b32.xlu0 %v319, 29
        %v609 = vpop.permute.xlu0 %608
        %610 = vrot.lane.b32.xlu0 %v320, 29
        %v611 = vpop.permute.xlu0 %610
        %vm612 = vcmp.lt.s32.totalorder %v326, 29
        %v613 = vsel %vm612, %v609, %v611
        %v614 = vsel %vm612, %v611, %v609
        %s615 = scalar_lea.vmem [#allocation5], 52
        %v616 = vld [vmem:[%s615] sm:$0xf]
        %v619 = vcombine.low %v614, %v613
        %v621 = vunpack.c.l.s4 1983009808
        %v622 = vunpack.c.0.s8 %v621
        %v623 = vlaneseq
        %v624 = vshrl.u32 %v623, 7
        %v625 = vsub.s32 %v622, %v624
        %v626 = vrot.slane %v619, %v625
        %v628 = vmul.f32 %v616, %v626
        %v629 = vadd.f32 %v541, %v628
        %630 = vrot.lane.b32.xlu0 %v319, 19
        %v631 = vpop.permute.xlu0 %630
        %632 = vrot.lane.b32.xlu0 %v320, 19
        %v633 = vpop.permute.xlu0 %632
        %vm634 = vcmp.lt.s32.totalorder %v326, 19
        %v635 = vsel %vm634, %v631, %v633
        %v636 = vsel %vm634, %v633, %v631
        %s637 = scalar_lea.vmem [#allocation5], 56
        %v638 = vld [vmem:[%s637] sm:$0xf]
        %v641 = vcombine.low %v636, %v635
        %v643 = vunpack.c.l.s4 1983009808
        %v644 = vunpack.c.0.s8 %v643
        %v645 = vlaneseq
        %v646 = vshrl.u32 %v645, 7
        %v647 = vsub.s32 %v644, %v646
        %v648 = vrot.slane %v641, %v647
        %v650 = vmul.f32 %v638, %v648
        %v651 = vadd.f32 %v563, %v650
        %652 = vrot.lane.b32.xlu0 %v319, 18
        %v653 = vpop.permute.xlu0 %652
        %654 = vrot.lane.b32.xlu0 %v320, 18
        %v655 = vpop.permute.xlu0 %654
        %vm656 = vcmp.lt.s32.totalorder %v326, 18
        %v657 = vsel %vm656, %v653, %v655
        %v658 = vsel %vm656, %v655, %v653
        %s659 = scalar_lea.vmem [#allocation5], 60
        %v660 = vld [vmem:[%s659] sm:$0xf]
        %v663 = vcombine.low %v658, %v657
        %v665 = vunpack.c.l.s4 1983009808
        %v666 = vunpack.c.0.s8 %v665
        %v667 = vlaneseq
        %v668 = vshrl.u32 %v667, 7
        %v669 = vsub.s32 %v666, %v668
        %v670 = vrot.slane %v663, %v669
        %v672 = vmul.f32 %v660, %v670
        %v673 = vadd.f32 %v585, %v672
        %674 = vrot.lane.b32.xlu0 %v319, 17
        %v675 = vpop.permute.xlu0 %674
        %676 = vrot.lane.b32.xlu0 %v320, 17
        %v677 = vpop.permute.xlu0 %676
        %vm678 = vcmp.lt.s32.totalorder %v326, 17
        %v679 = vsel %vm678, %v675, %v677
        %v680 = vsel %vm678, %v677, %v675
        %s681 = scalar_lea.vmem [#allocation5], 64
        %v682 = vld [vmem:[%s681] sm:$0xf]
        %v685 = vcombine.low %v680, %v679
        %v687 = vunpack.c.l.s4 1983009808
        %v688 = vunpack.c.0.s8 %v687
        %v689 = vlaneseq
        %v690 = vshrl.u32 %v689, 7
        %v691 = vsub.s32 %v688, %v690
        %v692 = vrot.slane %v685, %v691
        %v694 = vmul.f32 %v682, %v692
        %v695 = vadd.f32 %v607, %v694
        %696 = vrot.lane.b32.xlu0 %v319, 16
        %v697 = vpop.permute.xlu0 %696
        %698 = vrot.lane.b32.xlu0 %v320, 16
        %v699 = vpop.permute.xlu0 %698
        %vm700 = vcmp.lt.s32.totalorder %v326, 16
        %v701 = vsel %vm700, %v697, %v699
        %v702 = vsel %vm700, %v699, %v697
        %s703 = scalar_lea.vmem [#allocation5], 68
        %v704 = vld [vmem:[%s703] sm:$0xf]
        %v707 = vcombine.low %v702, %v701
        %v709 = vunpack.c.l.s4 1983009808
        %v710 = vunpack.c.0.s8 %v709
        %v711 = vlaneseq
        %v712 = vshrl.u32 %v711, 7
        %v713 = vsub.s32 %v710, %v712
        %v714 = vrot.slane %v707, %v713
        %v716 = vmul.f32 %v704, %v714
        %v717 = vadd.f32 %v629, %v716
        %718 = vrot.lane.b32.xlu0 %v319, 15
        %v719 = vpop.permute.xlu0 %718
        %720 = vrot.lane.b32.xlu0 %v320, 15
        %v721 = vpop.permute.xlu0 %720
        %vm722 = vcmp.lt.s32.totalorder %v326, 15
        %v723 = vsel %vm722, %v719, %v721
        %v724 = vsel %vm722, %v721, %v719
        %s725 = scalar_lea.vmem [#allocation5], 72
        %v726 = vld [vmem:[%s725] sm:$0xf]
        %v729 = vcombine.low %v724, %v723
        %v731 = vunpack.c.l.s4 1983009808
        %v732 = vunpack.c.0.s8 %v731
        %v733 = vlaneseq
        %v734 = vshrl.u32 %v733, 7
        %v735 = vsub.s32 %v732, %v734
        %v736 = vrot.slane %v729, %v735
        %v738 = vmul.f32 %v726, %v736
        %v739 = vadd.f32 %v651, %v738
        %740 = vrot.lane.b32.xlu0 %v319, 14
        %v741 = vpop.permute.xlu0 %740
        %742 = vrot.lane.b32.xlu0 %v320, 14
        %v743 = vpop.permute.xlu0 %742
        %vm744 = vcmp.lt.s32.totalorder %v326, 14
        %v745 = vsel %vm744, %v741, %v743
        %v746 = vsel %vm744, %v743, %v741
        %s747 = scalar_lea.vmem [#allocation5], 76
        %v748 = vld [vmem:[%s747] sm:$0xf]
        %v751 = vcombine.low %v746, %v745
        %v753 = vunpack.c.l.s4 1983009808
        %v754 = vunpack.c.0.s8 %v753
        %v755 = vlaneseq
        %v756 = vshrl.u32 %v755, 7
        %v757 = vsub.s32 %v754, %v756
        %v758 = vrot.slane %v751, %v757
        %v760 = vmul.f32 %v748, %v758
        %v761 = vadd.f32 %v673, %v760
        %762 = vrot.lane.b32.xlu0 %v319, 13
        %v763 = vpop.permute.xlu0 %762
        %764 = vrot.lane.b32.xlu0 %v320, 13
        %v765 = vpop.permute.xlu0 %764
        %vm766 = vcmp.lt.s32.totalorder %v326, 13
        %v767 = vsel %vm766, %v763, %v765
        %v768 = vsel %vm766, %v765, %v763
        %s769 = scalar_lea.vmem [#allocation5], 80
        %v770 = vld [vmem:[%s769] sm:$0xf]
        %v773 = vcombine.low %v768, %v767
        %v775 = vunpack.c.l.s4 1983009808
        %v776 = vunpack.c.0.s8 %v775
        %v777 = vlaneseq
        %v778 = vshrl.u32 %v777, 7
        %v779 = vsub.s32 %v776, %v778
        %v780 = vrot.slane %v773, %v779
        %v782 = vmul.f32 %v770, %v780
        %v783 = vadd.f32 %v695, %v782
        %784 = vrot.lane.b32.xlu0 %v319, 3
        %v785 = vpop.permute.xlu0 %784
        %786 = vrot.lane.b32.xlu0 %v320, 3
        %v787 = vpop.permute.xlu0 %786
        %vm788 = vcmp.lt.s32.totalorder %v326, 3
        %v789 = vsel %vm788, %v785, %v787
        %v790 = vsel %vm788, %v787, %v785
        %s791 = scalar_lea.vmem [#allocation5], 84
        %v792 = vld [vmem:[%s791] sm:$0xf]
        %v795 = vcombine.low %v790, %v789
        %v797 = vunpack.c.l.s4 1983009808
        %v798 = vunpack.c.0.s8 %v797
        %v799 = vlaneseq
        %v800 = vshrl.u32 %v799, 7
        %v801 = vsub.s32 %v798, %v800
        %v802 = vrot.slane %v795, %v801
        %v804 = vmul.f32 %v792, %v802
        %v805 = vadd.f32 %v717, %v804
        %806 = vrot.lane.b32.xlu0 %v319, 2
        %v807 = vpop.permute.xlu0 %806
        %808 = vrot.lane.b32.xlu0 %v320, 2
        %v809 = vpop.permute.xlu0 %808
        %vm810 = vcmp.lt.s32.totalorder %v326, 2
        %v811 = vsel %vm810, %v807, %v809
        %v812 = vsel %vm810, %v809, %v807
        %s813 = scalar_lea.vmem [#allocation5], 88
        %v814 = vld [vmem:[%s813] sm:$0xf]
        %v817 = vcombine.low %v812, %v811
        %v819 = vunpack.c.l.s4 1983009808
        %v820 = vunpack.c.0.s8 %v819
        %v821 = vlaneseq
        %v822 = vshrl.u32 %v821, 7
        %v823 = vsub.s32 %v820, %v822
        %v824 = vrot.slane %v817, %v823
        %v826 = vmul.f32 %v814, %v824
        %v827 = vadd.f32 %v739, %v826
        %828 = vrot.lane.b32.xlu0 %v319, 1
        %v829 = vpop.permute.xlu0 %828
        %830 = vrot.lane.b32.xlu0 %v320, 1
        %v831 = vpop.permute.xlu0 %830
        %vm832 = vcmp.lt.s32.totalorder %v326, 1
        %v833 = vsel %vm832, %v829, %v831
        %v834 = vsel %vm832, %v831, %v829
        %s835 = scalar_lea.vmem [#allocation5], 92
        %v836 = vld [vmem:[%s835] sm:$0xf]
        %v839 = vcombine.low %v834, %v833
        %v841 = vunpack.c.l.s4 1983009808
        %v842 = vunpack.c.0.s8 %v841
        %v843 = vlaneseq
        %v844 = vshrl.u32 %v843, 7
        %v845 = vsub.s32 %v842, %v844
        %v846 = vrot.slane %v839, %v845
        %v848 = vmul.f32 %v836, %v846
        %v849 = vadd.f32 %v761, %v848
        %s850 = scalar_lea.vmem [#allocation5], 96
        %v851 = vld [vmem:[%s850] sm:$0xf]
        %v854 = vcombine.low %v319, %v320
        %v856 = vunpack.c.l.s4 1983009808
        %v857 = vunpack.c.0.s8 %v856
        %v858 = vlaneseq
        %v859 = vshrl.u32 %v858, 7
        %v860 = vsub.s32 %v857, %v859
        %v861 = vrot.slane %v854, %v860
        %v863 = vmul.f32 %v851, %v861
        %v864 = vadd.f32 %v783, %v863
        %865 = vrot.lane.b32.xlu0 %v319, 127
        %v866 = vpop.permute.xlu0 %865
        %867 = vrot.lane.b32.xlu0 %v320, 127
        %v868 = vpop.permute.xlu0 %867
        %vm869 = vcmp.lt.s32.totalorder %v326, 127
        %v870 = vsel %vm869, %v866, %v868
        %v871 = vsel %vm869, %v868, %v866
        %s872 = scalar_lea.vmem [#allocation5], 100
        %v873 = vld [vmem:[%s872] sm:$0xf]
        %v876 = vcombine.low %v870, %v871
        %v878 = vunpack.c.l.s4 1983009808
        %v879 = vunpack.c.0.s8 %v878
        %v880 = vlaneseq
        %v881 = vshrl.u32 %v880, 7
        %v882 = vsub.s32 %v879, %v881
        %v883 = vrot.slane %v876, %v882
        %v885 = vmul.f32 %v873, %v883
        %v886 = vadd.f32 %v805, %v885
        %887 = vrot.lane.b32.xlu0 %v319, 126
        %v888 = vpop.permute.xlu0 %887
        %889 = vrot.lane.b32.xlu0 %v320, 126
        %v890 = vpop.permute.xlu0 %889
        %vm891 = vcmp.lt.s32.totalorder %v326, 126
        %v892 = vsel %vm891, %v888, %v890
        %v893 = vsel %vm891, %v890, %v888
        %s894 = scalar_lea.vmem [#allocation5], 104
        %v895 = vld [vmem:[%s894] sm:$0xf]
        %v898 = vcombine.low %v892, %v893
        %v900 = vunpack.c.l.s4 1983009808
        %v901 = vunpack.c.0.s8 %v900
        %v902 = vlaneseq
        %v903 = vshrl.u32 %v902, 7
        %v904 = vsub.s32 %v901, %v903
        %v905 = vrot.slane %v898, %v904
        %v907 = vmul.f32 %v895, %v905
        %v908 = vadd.f32 %v827, %v907
        %909 = vrot.lane.b32.xlu0 %v319, 125
        %v910 = vpop.permute.xlu0 %909
        %911 = vrot.lane.b32.xlu0 %v320, 125
        %v912 = vpop.permute.xlu0 %911
        %vm913 = vcmp.lt.s32.totalorder %v326, 125
        %v914 = vsel %vm913, %v910, %v912
        %v915 = vsel %vm913, %v912, %v910
        %s916 = scalar_lea.vmem [#allocation5], 108
        %v917 = vld [vmem:[%s916] sm:$0xf]
        %v920 = vcombine.low %v914, %v915
        %v922 = vunpack.c.l.s4 1983009808
        %v923 = vunpack.c.0.s8 %v922
        %v924 = vlaneseq
        %v925 = vshrl.u32 %v924, 7
        %v926 = vsub.s32 %v923, %v925
        %v927 = vrot.slane %v920, %v926
        %v929 = vmul.f32 %v917, %v927
        %v930 = vadd.f32 %v849, %v929
        %931 = vrot.lane.b32.xlu0 %v319, 115
        %v932 = vpop.permute.xlu0 %931
        %933 = vrot.lane.b32.xlu0 %v320, 115
        %v934 = vpop.permute.xlu0 %933
        %vm935 = vcmp.lt.s32.totalorder %v326, 115
        %v936 = vsel %vm935, %v932, %v934
        %v937 = vsel %vm935, %v934, %v932
        %s938 = scalar_lea.vmem [#allocation5], 112
        %v939 = vld [vmem:[%s938] sm:$0xf]
        %v942 = vcombine.low %v936, %v937
        %v944 = vunpack.c.l.s4 1983009808
        %v945 = vunpack.c.0.s8 %v944
        %v946 = vlaneseq
        %v947 = vshrl.u32 %v946, 7
        %v948 = vsub.s32 %v945, %v947
        %v949 = vrot.slane %v942, %v948
        %v951 = vmul.f32 %v939, %v949
        %v952 = vadd.f32 %v864, %v951
        %953 = vrot.lane.b32.xlu0 %v319, 114
        %v954 = vpop.permute.xlu0 %953
        %955 = vrot.lane.b32.xlu0 %v320, 114
        %v956 = vpop.permute.xlu0 %955
        %vm957 = vcmp.lt.s32.totalorder %v326, 114
        %v958 = vsel %vm957, %v954, %v956
        %v959 = vsel %vm957, %v956, %v954
        %s960 = scalar_lea.vmem [#allocation5], 116
        %v961 = vld [vmem:[%s960] sm:$0xf]
        %v964 = vcombine.low %v958, %v959
        %v966 = vunpack.c.l.s4 1983009808
        %v967 = vunpack.c.0.s8 %v966
        %v968 = vlaneseq
        %v969 = vshrl.u32 %v968, 7
        %v970 = vsub.s32 %v967, %v969
        %v971 = vrot.slane %v964, %v970
        %v973 = vmul.f32 %v961, %v971
        %v974 = vadd.f32 %v886, %v973
        %975 = vrot.lane.b32.xlu0 %v319, 113
        %v976 = vpop.permute.xlu0 %975
        %977 = vrot.lane.b32.xlu0 %v320, 113
        %v978 = vpop.permute.xlu0 %977
        %vm979 = vcmp.lt.s32.totalorder %v326, 113
        %v980 = vsel %vm979, %v976, %v978
        %v981 = vsel %vm979, %v978, %v976
        %s982 = scalar_lea.vmem [#allocation5], 120
        %v983 = vld [vmem:[%s982] sm:$0xf]
        %v986 = vcombine.low %v980, %v981
        %v988 = vunpack.c.l.s4 1983009808
        %v989 = vunpack.c.0.s8 %v988
        %v990 = vlaneseq
        %v991 = vshrl.u32 %v990, 7
        %v992 = vsub.s32 %v989, %v991
        %v993 = vrot.slane %v986, %v992
        %v995 = vmul.f32 %v983, %v993
        %v996 = vadd.f32 %v908, %v995
        %997 = vrot.lane.b32.xlu0 %v319, 112
        %v998 = vpop.permute.xlu0 %997
        %999 = vrot.lane.b32.xlu0 %v320, 112
        %v1000 = vpop.permute.xlu0 %999
        %vm1001 = vcmp.lt.s32.totalorder %v326, 112
        %v1002 = vsel %vm1001, %v998, %v1000
        %v1003 = vsel %vm1001, %v1000, %v998
        %s1004 = scalar_lea.vmem [#allocation5], 124
        %v1005 = vld [vmem:[%s1004] sm:$0xf]
        %v1008 = vcombine.low %v1002, %v1003
        %v1010 = vunpack.c.l.s4 1983009808
        %v1011 = vunpack.c.0.s8 %v1010
        %v1012 = vlaneseq
        %v1013 = vshrl.u32 %v1012, 7
        %v1014 = vsub.s32 %v1011, %v1013
        %v1015 = vrot.slane %v1008, %v1014
        %v1017 = vmul.f32 %v1005, %v1015
        %v1018 = vadd.f32 %v930, %v1017
        %1019 = vrot.lane.b32.xlu0 %v319, 111
        %v1020 = vpop.permute.xlu0 %1019
        %1021 = vrot.lane.b32.xlu0 %v320, 111
        %v1022 = vpop.permute.xlu0 %1021
        %vm1023 = vcmp.lt.s32.totalorder %v326, 111
        %v1024 = vsel %vm1023, %v1020, %v1022
        %v1025 = vsel %vm1023, %v1022, %v1020
        %s1026 = scalar_lea.vmem [#allocation5], 128
        %v1027 = vld [vmem:[%s1026] sm:$0xf]
        %v1030 = vcombine.low %v1024, %v1025
        %v1032 = vunpack.c.l.s4 1983009808
        %v1033 = vunpack.c.0.s8 %v1032
        %v1034 = vlaneseq
        %v1035 = vshrl.u32 %v1034, 7
        %v1036 = vsub.s32 %v1033, %v1035
        %v1037 = vrot.slane %v1030, %v1036
        %v1039 = vmul.f32 %v1027, %v1037
        %v1040 = vadd.f32 %v952, %v1039
        %1041 = vrot.lane.b32.xlu0 %v319, 110
        %v1042 = vpop.permute.xlu0 %1041
        %1043 = vrot.lane.b32.xlu0 %v320, 110
        %v1044 = vpop.permute.xlu0 %1043
        %vm1045 = vcmp.lt.s32.totalorder %v326, 110
        %v1046 = vsel %vm1045, %v1042, %v1044
        %v1047 = vsel %vm1045, %v1044, %v1042
        %s1048 = scalar_lea.vmem [#allocation5], 132
        %v1049 = vld [vmem:[%s1048] sm:$0xf]
        %v1052 = vcombine.low %v1046, %v1047
        %v1054 = vunpack.c.l.s4 1983009808
        %v1055 = vunpack.c.0.s8 %v1054
        %v1056 = vlaneseq
        %v1057 = vshrl.u32 %v1056, 7
        %v1058 = vsub.s32 %v1055, %v1057
        %v1059 = vrot.slane %v1052, %v1058
        %v1061 = vmul.f32 %v1049, %v1059
        %v1062 = vadd.f32 %v974, %v1061
        %1063 = vrot.lane.b32.xlu0 %v319, 109
        %v1064 = vpop.permute.xlu0 %1063
        %1065 = vrot.lane.b32.xlu0 %v320, 109
        %v1066 = vpop.permute.xlu0 %1065
        %vm1067 = vcmp.lt.s32.totalorder %v326, 109
        %v1068 = vsel %vm1067, %v1064, %v1066
        %v1069 = vsel %vm1067, %v1066, %v1064
        %s1070 = scalar_lea.vmem [#allocation5], 136
        %v1071 = vld [vmem:[%s1070] sm:$0xf]
        %v1074 = vcombine.low %v1068, %v1069
        %v1076 = vunpack.c.l.s4 1983009808
        %v1077 = vunpack.c.0.s8 %v1076
        %v1078 = vlaneseq
        %v1079 = vshrl.u32 %v1078, 7
        %v1080 = vsub.s32 %v1077, %v1079
        %v1081 = vrot.slane %v1074, %v1080
        %v1083 = vmul.f32 %v1071, %v1081
        %v1084 = vadd.f32 %v996, %v1083
        %1085 = vrot.lane.b32.xlu0 %v319, 99
        %v1086 = vpop.permute.xlu0 %1085
        %1087 = vrot.lane.b32.xlu0 %v320, 99
        %v1088 = vpop.permute.xlu0 %1087
        %vm1089 = vcmp.lt.s32.totalorder %v326, 99
        %v1090 = vsel %vm1089, %v1086, %v1088
        %v1091 = vsel %vm1089, %v1088, %v1086
        %s1092 = scalar_lea.vmem [#allocation5], 140
        %v1093 = vld [vmem:[%s1092] sm:$0xf]
        %v1096 = vcombine.low %v1090, %v1091
        %v1098 = vunpack.c.l.s4 1983009808
        %v1099 = vunpack.c.0.s8 %v1098
        %v1100 = vlaneseq
        %v1101 = vshrl.u32 %v1100, 7
        %v1102 = vsub.s32 %v1099, %v1101
        %v1103 = vrot.slane %v1096, %v1102
        %v1105 = vmul.f32 %v1093, %v1103
        %v1106 = vadd.f32 %v1018, %v1105
        %1107 = vrot.lane.b32.xlu0 %v319, 98
        %v1108 = vpop.permute.xlu0 %1107
        %1109 = vrot.lane.b32.xlu0 %v320, 98
        %v1110 = vpop.permute.xlu0 %1109
        %vm1111 = vcmp.lt.s32.totalorder %v326, 98
        %v1112 = vsel %vm1111, %v1108, %v1110
        %v1113 = vsel %vm1111, %v1110, %v1108
        %s1114 = scalar_lea.vmem [#allocation5], 144
        %v1115 = vld [vmem:[%s1114] sm:$0xf]
        %v1118 = vcombine.low %v1112, %v1113
        %v1120 = vunpack.c.l.s4 1983009808
        %v1121 = vunpack.c.0.s8 %v1120
        %v1122 = vlaneseq
        %v1123 = vshrl.u32 %v1122, 7
        %v1124 = vsub.s32 %v1121, %v1123
        %v1125 = vrot.slane %v1118, %v1124
        %v1127 = vmul.f32 %v1115, %v1125
        %v1128 = vadd.f32 %v1040, %v1127
        %1129 = vrot.lane.b32.xlu0 %v319, 97
        %v1130 = vpop.permute.xlu0 %1129
        %1131 = vrot.lane.b32.xlu0 %v320, 97
        %v1132 = vpop.permute.xlu0 %1131
        %vm1133 = vcmp.lt.s32.totalorder %v326, 97
        %v1134 = vsel %vm1133, %v1130, %v1132
        %v1135 = vsel %vm1133, %v1132, %v1130
        %s1136 = scalar_lea.vmem [#allocation5], 148
        %v1137 = vld [vmem:[%s1136] sm:$0xf]
        %v1140 = vcombine.low %v1134, %v1135
        %v1142 = vunpack.c.l.s4 1983009808
        %v1143 = vunpack.c.0.s8 %v1142
        %v1144 = vlaneseq
        %v1145 = vshrl.u32 %v1144, 7
        %v1146 = vsub.s32 %v1143, %v1145
        %v1147 = vrot.slane %v1140, %v1146
        %v1149 = vmul.f32 %v1137, %v1147
        %v1150 = vadd.f32 %v1062, %v1149
        %1151 = vrot.lane.b32.xlu0 %v319, 96
        %v1152 = vpop.permute.xlu0 %1151
        %1153 = vrot.lane.b32.xlu0 %v320, 96
        %v1154 = vpop.permute.xlu0 %1153
        %vm1155 = vcmp.lt.s32.totalorder %v326, 96
        %v1156 = vsel %vm1155, %v1152, %v1154
        %v1157 = vsel %vm1155, %v1154, %v1152
        %s1158 = scalar_lea.vmem [#allocation5], 152
        %v1159 = vld [vmem:[%s1158] sm:$0xf]
        %v1162 = vcombine.low %v1156, %v1157
        %v1164 = vunpack.c.l.s4 1983009808
        %v1165 = vunpack.c.0.s8 %v1164
        %v1166 = vlaneseq
        %v1167 = vshrl.u32 %v1166, 7
        %v1168 = vsub.s32 %v1165, %v1167
        %v1169 = vrot.slane %v1162, %v1168
        %v1171 = vmul.f32 %v1159, %v1169
        %v1172 = vadd.f32 %v1084, %v1171
        %1173 = vrot.lane.b32.xlu0 %v319, 95
        %v1174 = vpop.permute.xlu0 %1173
        %1175 = vrot.lane.b32.xlu0 %v320, 95
        %v1176 = vpop.permute.xlu0 %1175
        %vm1177 = vcmp.lt.s32.totalorder %v326, 95
        %v1178 = vsel %vm1177, %v1174, %v1176
        %v1179 = vsel %vm1177, %v1176, %v1174
        %s1180 = scalar_lea.vmem [#allocation5], 156
        %v1181 = vld [vmem:[%s1180] sm:$0xf]
        %v1184 = vcombine.low %v1178, %v1179
        %v1186 = vunpack.c.l.s4 1983009808
        %v1187 = vunpack.c.0.s8 %v1186
        %v1188 = vlaneseq
        %v1189 = vshrl.u32 %v1188, 7
        %v1190 = vsub.s32 %v1187, %v1189
        %v1191 = vrot.slane %v1184, %v1190
        %v1193 = vmul.f32 %v1181, %v1191
        %v1194 = vadd.f32 %v1106, %v1193
        %1195 = vrot.lane.b32.xlu0 %v319, 94
        %v1196 = vpop.permute.xlu0 %1195
        %1197 = vrot.lane.b32.xlu0 %v320, 94
        %v1198 = vpop.permute.xlu0 %1197
        %vm1199 = vcmp.lt.s32.totalorder %v326, 94
        %v1200 = vsel %vm1199, %v1196, %v1198
        %v1201 = vsel %vm1199, %v1198, %v1196
        %s1202 = scalar_lea.vmem [#allocation5], 160
        %v1203 = vld [vmem:[%s1202] sm:$0xf]
        %v1206 = vcombine.low %v1200, %v1201
        %v1208 = vunpack.c.l.s4 1983009808
        %v1209 = vunpack.c.0.s8 %v1208
        %v1210 = vlaneseq
        %v1211 = vshrl.u32 %v1210, 7
        %v1212 = vsub.s32 %v1209, %v1211
        %v1213 = vrot.slane %v1206, %v1212
        %v1215 = vmul.f32 %v1203, %v1213
        %v1216 = vadd.f32 %v1128, %v1215
        %1217 = vrot.lane.b32.xlu0 %v319, 93
        %v1218 = vpop.permute.xlu0 %1217
        %1219 = vrot.lane.b32.xlu0 %v320, 93
        %v1220 = vpop.permute.xlu0 %1219
        %vm1221 = vcmp.lt.s32.totalorder %v326, 93
        %v1222 = vsel %vm1221, %v1218, %v1220
        %v1223 = vsel %vm1221, %v1220, %v1218
        %s1224 = scalar_lea.vmem [#allocation5], 164
        %v1225 = vld [vmem:[%s1224] sm:$0xf]
        %v1228 = vcombine.low %v1222, %v1223
        %v1230 = vunpack.c.l.s4 1983009808
        %v1231 = vunpack.c.0.s8 %v1230
        %v1232 = vlaneseq
        %v1233 = vshrl.u32 %v1232, 7
        %v1234 = vsub.s32 %v1231, %v1233
        %v1235 = vrot.slane %v1228, %v1234
        %v1237 = vmul.f32 %v1225, %v1235
        %v1238 = vadd.f32 %v1150, %v1237
        %1239 = vrot.lane.b32.xlu0 %v319, 83
        %v1240 = vpop.permute.xlu0 %1239
        %1241 = vrot.lane.b32.xlu0 %v320, 83
        %v1242 = vpop.permute.xlu0 %1241
        %vm1243 = vcmp.lt.s32.totalorder %v326, 83
        %v1244 = vsel %vm1243, %v1240, %v1242
        %v1245 = vsel %vm1243, %v1242, %v1240
        %s1246 = scalar_lea.vmem [#allocation5], 168
        %v1247 = vld [vmem:[%s1246] sm:$0xf]
        %v1250 = vcombine.low %v1244, %v1245
        %v1252 = vunpack.c.l.s4 1983009808
        %v1253 = vunpack.c.0.s8 %v1252
        %v1254 = vlaneseq
        %v1255 = vshrl.u32 %v1254, 7
        %v1256 = vsub.s32 %v1253, %v1255
        %v1257 = vrot.slane %v1250, %v1256
        %v1259 = vmul.f32 %v1247, %v1257
        %v1260 = vadd.f32 %v1172, %v1259
        %1261 = vrot.lane.b32.xlu0 %v319, 82
        %v1262 = vpop.permute.xlu0 %1261
        %1263 = vrot.lane.b32.xlu0 %v320, 82
        %v1264 = vpop.permute.xlu0 %1263
        %vm1265 = vcmp.lt.s32.totalorder %v326, 82
        %v1266 = vsel %vm1265, %v1262, %v1264
        %v1267 = vsel %vm1265, %v1264, %v1262
        %s1268 = scalar_lea.vmem [#allocation5], 172
        %v1269 = vld [vmem:[%s1268] sm:$0xf]
        %v1272 = vcombine.low %v1266, %v1267
        %v1274 = vunpack.c.l.s4 1983009808
        %v1275 = vunpack.c.0.s8 %v1274
        %v1276 = vlaneseq
        %v1277 = vshrl.u32 %v1276, 7
        %v1278 = vsub.s32 %v1275, %v1277
        %v1279 = vrot.slane %v1272, %v1278
        %v1281 = vmul.f32 %v1269, %v1279
        %v1282 = vadd.f32 %v1194, %v1281
        %1283 = vrot.lane.b32.xlu0 %v319, 81
        %v1284 = vpop.permute.xlu0 %1283
        %1285 = vrot.lane.b32.xlu0 %v320, 81
        %v1286 = vpop.permute.xlu0 %1285
        %vm1287 = vcmp.lt.s32.totalorder %v326, 81
        %v1288 = vsel %vm1287, %v1284, %v1286
        %v1289 = vsel %vm1287, %v1286, %v1284
        %s1290 = scalar_lea.vmem [#allocation5], 176
        %v1291 = vld [vmem:[%s1290] sm:$0xf]
        %v1294 = vcombine.low %v1288, %v1289
        %v1296 = vunpack.c.l.s4 1983009808
        %v1297 = vunpack.c.0.s8 %v1296
        %v1298 = vlaneseq
        %v1299 = vshrl.u32 %v1298, 7
        %v1300 = vsub.s32 %v1297, %v1299
        %v1301 = vrot.slane %v1294, %v1300
        %v1303 = vmul.f32 %v1291, %v1301
        %v1304 = vadd.f32 %v1216, %v1303
        %1305 = vrot.lane.b32.xlu0 %v319, 80
        %v1306 = vpop.permute.xlu0 %1305
        %1307 = vrot.lane.b32.xlu0 %v320, 80
        %v1308 = vpop.permute.xlu0 %1307
        %vm1309 = vcmp.lt.s32.totalorder %v326, 80
        %v1310 = vsel %vm1309, %v1306, %v1308
        %v1311 = vsel %vm1309, %v1308, %v1306
        %s1312 = scalar_lea.vmem [#allocation5], 180
        %v1313 = vld [vmem:[%s1312] sm:$0xf]
        %v1316 = vcombine.low %v1310, %v1311
        %v1318 = vunpack.c.l.s4 1983009808
        %v1319 = vunpack.c.0.s8 %v1318
        %v1320 = vlaneseq
        %v1321 = vshrl.u32 %v1320, 7
        %v1322 = vsub.s32 %v1319, %v1321
        %v1323 = vrot.slane %v1316, %v1322
        %v1325 = vmul.f32 %v1313, %v1323
        %v1326 = vadd.f32 %v1238, %v1325
        %1327 = vrot.lane.b32.xlu0 %v319, 79
        %v1328 = vpop.permute.xlu0 %1327
        %1329 = vrot.lane.b32.xlu0 %v320, 79
        %v1330 = vpop.permute.xlu0 %1329
        %vm1331 = vcmp.lt.s32.totalorder %v326, 79
        %v1332 = vsel %vm1331, %v1328, %v1330
        %v1333 = vsel %vm1331, %v1330, %v1328
        %s1334 = scalar_lea.vmem [#allocation5], 184
        %v1335 = vld [vmem:[%s1334] sm:$0xf]
        %v1338 = vcombine.low %v1332, %v1333
        %v1340 = vunpack.c.l.s4 1983009808
        %v1341 = vunpack.c.0.s8 %v1340
        %v1342 = vlaneseq
        %v1343 = vshrl.u32 %v1342, 7
        %v1344 = vsub.s32 %v1341, %v1343
        %v1345 = vrot.slane %v1338, %v1344
        %v1347 = vmul.f32 %v1335, %v1345
        %v1348 = vadd.f32 %v1260, %v1347
        %1349 = vrot.lane.b32.xlu0 %v319, 78
        %v1350 = vpop.permute.xlu0 %1349
        %1351 = vrot.lane.b32.xlu0 %v320, 78
        %v1352 = vpop.permute.xlu0 %1351
        %vm1353 = vcmp.lt.s32.totalorder %v326, 78
        %v1354 = vsel %vm1353, %v1350, %v1352
        %v1355 = vsel %vm1353, %v1352, %v1350
        %s1356 = scalar_lea.vmem [#allocation5], 188
        %v1357 = vld [vmem:[%s1356] sm:$0xf]
        %v1360 = vcombine.low %v1354, %v1355
        %v1362 = vunpack.c.l.s4 1983009808
        %v1363 = vunpack.c.0.s8 %v1362
        %v1364 = vlaneseq
        %v1365 = vshrl.u32 %v1364, 7
        %v1366 = vsub.s32 %v1363, %v1365
        %v1367 = vrot.slane %v1360, %v1366
        %v1369 = vmul.f32 %v1357, %v1367
        %v1370 = vadd.f32 %v1282, %v1369
        %1371 = vrot.lane.b32.xlu0 %v319, 77
        %v1372 = vpop.permute.xlu0 %1371
        %1373 = vrot.lane.b32.xlu0 %v320, 77
        %v1374 = vpop.permute.xlu0 %1373
        %vm1375 = vcmp.lt.s32.totalorder %v326, 77
        %v1376 = vsel %vm1375, %v1372, %v1374
        %v1377 = vsel %vm1375, %v1374, %v1372
        %s1378 = scalar_lea.vmem [#allocation5], 192
        %v1379 = vld [vmem:[%s1378] sm:$0xf]
        %v1382 = vcombine.low %v1376, %v1377
        %v1384 = vunpack.c.l.s4 1983009808
        %v1385 = vunpack.c.0.s8 %v1384
        %v1386 = vlaneseq
        %v1387 = vshrl.u32 %v1386, 7
        %v1388 = vsub.s32 %v1385, %v1387
        %v1389 = vrot.slane %v1382, %v1388
        %v1391 = vmul.f32 %v1379, %v1389
        %v1392 = vadd.f32 %v1304, %v1391
        %v1393 = vadd.f32 %v1392, %v1326
        %v1394 = vadd.f32 %v1348, %v1370
        %v1395 = vadd.f32 %v1393, %v1394
        %v1398 = vunpack.c.l.s4 1983009808
        %v1399 = vunpack.c.0.s8 %v1398
        %v1400 = vlaneseq
        %v1401 = vshrl.u32 %v1400, 7
        %v1402 = vsub.s32 %v1399, %v1401
        %v1403 = vrot.slane %v1395, %v1402
        %v1404 = vcombine.high %v1403, %v1403
        %vm1407 = vcmask 1041408
        %v1408 = vsel %vm1407, %v1403, 0.0
        %v1409 = vrot.slane %v1408, 4
        %v1410 = vadd.f32 %v1408, %v1409
        %v1411 = vrot.slane %v1410, 2
        %v1412 = vadd.f32 %v1410, %v1411
        %v1413 = vrot.slane %v1412, 1
        %v1414 = vadd.f32 %v1412, %v1413
        %v1415 = vsel %vm1407, %v1404, 0.0
        %v1416 = vrot.slane %v1415, 4
        %v1417 = vadd.f32 %v1415, %v1416
        %v1418 = vrot.slane %v1417, 2
        %v1419 = vadd.f32 %v1417, %v1418
        %v1420 = vrot.slane %v1419, 1
        %v1421 = vadd.f32 %v1419, %v1420
        %v1422 = vxor.u32 %v1414, 2147483648
        %v1423 = vxor.u32 %v1421, 2147483648
        %v1424 = vmul.f32 %v1422, 1.442695
        %v1425 = vpow.pop %v1424
        %v1426 = vmul.f32 %v1423, 1.442695
        %v1427 = vpow.pop %v1426
        %v1428 = vadd.f32 %v1425, 1.0
        %v1429 = vadd.f32 %v1427, 1.0
        %v1430 = vrcp.pop %v1428
        %v1431 = vmul.f32 1.0, %v1430
        %v1432 = vrcp.pop %v1429
        %v1433 = vmul.f32 1.0, %v1432
        %v1434 = vmul.f32 %v283, %v1431
        %v1435 = vmul.f32 %v284, %v1433
        %v1436 = vmul.f32 %v285, %v1431
        %v1437 = vmul.f32 %v286, %v1433
        %1438 = vst [vmem:[%s203] sm:$0xff] %v1434
        %1439 = vst [vmem:[%s203 + $0x8] sm:$0xff] %v1435
        %1440 = vst [vmem:[%s203 + $0x10] sm:$0xff] %v1436
        %1441 = vst [vmem:[%s203 + $0x18] sm:$0xff] %v1437
        %s1442 = sand.u32 %s97, 1
        %s1443 = scalar_lea.sflag [#allocation4], %s1442
        %s1444 = sand.u32 %s97, 1
        %s1445 = smul.addr %s1444, 32
        %s1446 = scalar_lea.vmem [#allocation7], %s1445
        // Predicated region
        $region41: #{tpu_custom_call.1} parent=31 // pred_check
          %p1447 = pneg %p107
        $region42: #{tpu_custom_call.1} parent=31 // pred_check_branch
          %1449 = sbr.rel (%p1447) target = $region44
        $region43: #{tpu_custom_call.1} parent=31 // pred_region
          %s1451 = ssub.s32 512, 512
          %1452 = vsyncadd %s1443, %s1451
          %s1453 = smul.addr %s21, 4
          %s1454 = smul.addr %s1453, 128
          %s1455 = scalar_lea.hbm %s3, %s1454
          %s1456 = sshll.u32 %s1446, 4
          %s1457 = int_to_ptr.vmem [resolvable:$true] %s1456
          %1462 = dma.vmem_to_hbm [thread:$0]  %s1457, 512, %s1455, %s1443, 256, 256, 16
        $region44: #{tpu_custom_call.1} parent=31 // pred_fallthru
          _
      $region32: #{tpu_custom_call.1} parent=5 // pred_fallthru
        _
      %p1463 = scmp.le.s32.totalorder 2, %s16
      // Predicated region
      $region45: #{tpu_custom_call.1} parent=5 // pred_check
        %p1464 = pneg %p1463
      $region46: #{tpu_custom_call.1} parent=5 // pred_check_branch
        %1466 = sbr.rel (%p1464) target = $region48
      $region47: #{tpu_custom_call.1} parent=5 // pred_region
        %s1467 = ssub.s32 %s16, 2
        // Predicated region
        $region49: #{tpu_custom_call.1} parent=47 // pred_check
          %p1468 = pneg %p113
        $region50: #{tpu_custom_call.1} parent=47 // pred_check_branch
          %1470 = sbr.rel (%p1468) target = $region52
        $region51: #{tpu_custom_call.1} parent=47 // pred_region
          %s1471 = sand.u32 %s98, 1
          %s1472 = scalar_lea.sflag [#allocation4], %s1471
          %s1473 = sand.u32 %s98, 1
          %s1474 = smul.addr %s1473, 32
          %s1475 = scalar_lea.vmem [#allocation7], %s1474
          %1476 = dma.done %s1472, 512
        $region52: #{tpu_custom_call.1} parent=47 // pred_fallthru
          _
      $region48: #{tpu_custom_call.1} parent=5 // pred_fallthru
        _
    $region6: #{tpu_custom_call.1} parent=1 // loop_footer
      %s20 = sadd.s32 1, %s16
    $region7: #{tpu_custom_call.1} parent=1 // loop_footer_branch
      %15 = sbr.rel target = $region3
    $region8: #{tpu_custom_call.1} parent=1 // loop_exit
      _
    %1477 = vsyncpa [#allocation3], 1
    %s1478 = scalar_lea.sflag [#allocation3], 1
    %1479 = vsyncpa %s1478, 1
    %1480 = vsyncpa [#allocation6], 1
    %1481 = vsyncpa [#allocation4], 1
    %s1482 = scalar_lea.sflag [#allocation4], 1
    %1483 = vsyncpa %s1482, 1

</llo_original>
